<compile_context>
chip_gen: v5e
topology: v5e:2x2
jax: 0.10.0
libtpu: 0.0.40
codegen_flags: <defaults>
</compile_context>

<pallas_src>
import functools

import jax
import jax.numpy as jnp
from jax.experimental import pallas as pl
from jax.experimental.pallas import tpu as pltpu


def _gesture_lstm_kernel(x_ref, wih_ref, whh_ref, b_ref,
                         w1_ref, b1_ref, w2_ref, b2_ref, out_ref):
    """Fused LSTM + FC head.

    x_ref   : (T*Bp, Fp) bf16  time-major, flattened, batch- & feature-padded input
    wih_ref : (Fp, 4H)   bf16  input->gates weights (pre-transposed, gate order i,f,o,g)
    whh_ref : (H, 4H)    bf16  hidden->gates weights (pre-transposed, gate order i,f,o,g)
    b_ref   : (1, 4H)    f32   combined bias b_ih + b_hh (gate order i,f,o,g)
    w1_ref  : (H, 128)   bf16 ; b1_ref: (1, 128) f32   fc1 (pre-transposed, width padded 64->128)
    w2_ref  : (128, Cp)  bf16 ; b2_ref: (1, Cp)  f32   fc2 (pre-transposed, rows/cols zero-padded)
    out_ref : (Bp, Cp)   f32   padded logits (wrapper slices to [B, num_classes])

    Per step: one bf16 MXU matmul + 3 EUP launches (sigmoid(i,f), sigmoid(o),
    tanh(g)) + tanh(c) + f32 VPU updates.
    """
    TB = x_ref.shape[0]
    H = whh_ref.shape[0]
    Bp = out_ref.shape[0]          # sublane-padded batch (multiple of 8)
    T = TB // Bp

    w_hh = whh_ref[...]            # (H, 4H) bf16, VMEM-resident across all steps
    b = b_ref[...]                 # (1, 4H) f32

    # Hoisted input projection: one big MXU matmul, off the serial critical path.
    gates_x = (jnp.dot(x_ref[...], wih_ref[...],
                       preferred_element_type=jnp.float32) + b)   # (T*Bp, 4H) f32

    h = jnp.zeros((Bp, H), jnp.float32)
    c = jnp.zeros((Bp, H), jnp.float32)

    # Fully unrolled recurrence (T=8).
    # TODO(synk): on a fixed target generation, pin w_hh in the MXU weight
    # registers across the 8 steps (pltpu.matmul_push_rhs once, then
    # matmul_acc_lhs / matmul_pop per step, gate slabs split per-MXU: 4x128 on
    # v5e, 2x256 on v6e/v7x; MRB-accumulate gx_t on v7x).  Kept on jnp.dot here
    # so the same kernel lowers cleanly on every generation.
    for t in range(T):
        gx_t = gates_x[t * Bp:(t + 1) * Bp, :]          # (Bp, 4H) sublane-aligned static slice
        gates = (jnp.dot(h.astype(jnp.bfloat16), w_hh,
                         preferred_element_type=jnp.float32) + gx_t)
        # Gate order (i, f, o, g): c-update depends only on sigmoid(i,f) and
        # tanh(g), so sigmoid(o) can sit in the EUP FIFO while c is computed.
        sig_if = jax.nn.sigmoid(gates[:, :2 * H])       # i | f  (one EUP launch)
        g_gate = jnp.tanh(gates[:, 3 * H:])             # g
        o_gate = jax.nn.sigmoid(gates[:, 2 * H:3 * H])  # o
        c = sig_if[:, H:] * c + sig_if[:, :H] * g_gate  # f32 elementwise
        h = o_gate * jnp.tanh(c)

    # FC head on the last hidden state: relu(fc1(h)) -> fc2, all full 128-lane tiles.
    hid = jnp.maximum(
        jnp.dot(h.astype(jnp.bfloat16), w1_ref[...],
                preferred_element_type=jnp.float32) + b1_ref[...],
        0.0)                                            # (Bp, 128) f32
    out_ref[...] = (jnp.dot(hid.astype(jnp.bfloat16), w2_ref[...],
                            preferred_element_type=jnp.float32) + b2_ref[...])


def init_params(key, input_size=63, hidden_size=128, num_classes=5):
    """Deterministic synthetic init mirroring PyTorch's default uniform ranges.

    Weights are stored pre-transposed to (in, out); LSTM gate order is PyTorch's
    (i, f, g, o); combined bias = b_ih + b_hh.
    """
    ks = jax.random.split(key, 8)

    def u(k, shape, bound):
        return jax.random.uniform(k, shape, jnp.float32, -bound, bound)

    bl = 1.0 / (hidden_size ** 0.5)           # LSTM: U(-1/sqrt(H), 1/sqrt(H))
    b1 = 1.0 / (hidden_size ** 0.5)           # fc1:  U(-1/sqrt(in), 1/sqrt(in))
    b2 = 1.0 / (64.0 ** 0.5)                  # fc2

    return {
        "w_ih": u(ks[0], (input_size, 4 * hidden_size), bl),
        "w_hh": u(ks[1], (hidden_size, 4 * hidden_size), bl),
        "b": u(ks[2], (1, 4 * hidden_size), bl) + u(ks[3], (1, 4 * hidden_size), bl),
        "w_fc1": u(ks[4], (hidden_size, 64), b1),
        "b_fc1": u(ks[5], (1, 64), b1),
        "w_fc2": u(ks[6], (64, num_classes), b2),
        "b_fc2": u(ks[7], (1, num_classes), b2),
    }


def prepare_params(params, f_pad=128, mid_pad=128, c_pad=128):
    """One-time prep: gate-column reorder (i,f,g,o)->(i,f,o,g), zero-pad the
    F contraction dim, the fc1 width (64->128) and the classifier output dim,
    and cast all MXU operands to bf16.  Every pad is exact (zeros)."""
    H = params["w_hh"].shape[0]
    # Reorder gate columns so sigmoid gates (i,f,o) are contiguous, tanh gate (g) last.
    perm = jnp.concatenate([
        jnp.arange(0, 2 * H),          # i, f
        jnp.arange(3 * H, 4 * H),      # o
        jnp.arange(2 * H, 3 * H),      # g
    ])
    w_ih = params["w_ih"][:, perm]
    w_hh = params["w_hh"][:, perm]
    b = params["b"][:, perm]

    # Zero-pad contraction dim F -> f_pad (padded rows multiply zero-padded features).
    w_ih = jnp.pad(w_ih, ((0, f_pad - w_ih.shape[0]), (0, 0)))

    # Zero-pad fc1 width 64 -> mid_pad and fc2 rows to match (relu(0)=0, 0*w=0).
    mid = params["w_fc1"].shape[1]
    w_fc1 = jnp.pad(params["w_fc1"], ((0, 0), (0, mid_pad - mid)))
    b_fc1 = jnp.pad(params["b_fc1"], ((0, 0), (0, mid_pad - mid)))

    # Zero-pad fc2 output dim to a lane-dense width (sliced off in the wrapper).
    C = params["w_fc2"].shape[1]
    w_fc2 = jnp.pad(params["w_fc2"], ((0, mid_pad - mid), (0, c_pad - C)))
    b_fc2 = jnp.pad(params["b_fc2"], ((0, 0), (0, c_pad - C)))

    return {
        "w_ih": w_ih.astype(jnp.bfloat16),
        "w_hh": w_hh.astype(jnp.bfloat16),
        "b": b.astype(jnp.float32),
        "w_fc1": w_fc1.astype(jnp.bfloat16),
        "b_fc1": b_fc1.astype(jnp.float32),
        "w_fc2": w_fc2.astype(jnp.bfloat16),
        "b_fc2": b_fc2.astype(jnp.float32),
    }


@functools.partial(jax.jit, static_argnames=("num_classes",))
def gesture_lstm_forward(x, prepped, num_classes):
    """x: [B, T, F] float32 (PyTorch batch_first layout). Returns [B, num_classes]."""
    B, T, F = x.shape
    Fp = prepped["w_ih"].shape[0]
    H = prepped["w_hh"].shape[0]
    Hmid = prepped["w_fc1"].shape[1]
    Cp = prepped["w_fc2"].shape[1]
    Bp = max(8, ((B + 7) // 8) * 8)           # pad batch to a full sublane tile

    # Pad batch and feature dims, go time-major, flatten to (T*Bp, Fp) for the
    # hoisted input projection; cast MXU operand to bf16.  Zero batch rows are
    # computed and discarded (exact for the real rows, LSTM is row-independent).
    xp = jnp.pad(x.astype(jnp.float32), ((0, Bp - B), (0, 0), (0, Fp - F)))
    x_tm = jnp.transpose(xp, (1, 0, 2)).reshape(T * Bp, Fp).astype(jnp.bfloat16)

    flops = (2 * T * Bp * Fp * 4 * H          # hoisted input projection
             + 2 * T * Bp * H * 4 * H         # recurrence
             + 2 * Bp * H * Hmid              # fc1
             + 2 * Bp * Hmid * Cp)            # fc2
    transcendentals = T * Bp * 5 * H          # sigmoid(i,f,o), tanh(g), tanh(c)
    bytes_accessed = int(
        x_tm.size * 2
        + sum(int(v.size) * v.dtype.itemsize for v in prepped.values())
        + Bp * Cp * 4)

    vmem = pl.BlockSpec(memory_space=pltpu.MemorySpace.VMEM)
    out_padded = pl.pallas_call(
        _gesture_lstm_kernel,
        out_shape=jax.ShapeDtypeStruct((Bp, Cp), jnp.float32),
        in_specs=[vmem] * 8,
        out_specs=vmem,
        cost_estimate=pl.CostEstimate(flops=flops,
                                      transcendentals=transcendentals,
                                      bytes_accessed=bytes_accessed),
        compiler_params=pltpu.CompilerParams(),   # gridless single invocation
    )(x_tm,
      prepped["w_ih"], prepped["w_hh"], prepped["b"],
      prepped["w_fc1"], prepped["b_fc1"], prepped["w_fc2"], prepped["b_fc2"])
    return out_padded[:B, :num_classes]


def _reference_forward(x, params):
    """Pure-JAX f32 reference with PyTorch LSTM semantics (gate order i,f,g,o)."""
    B, T, F = x.shape
    H = params["w_hh"].shape[0]
    w_ih, w_hh, b = params["w_ih"], params["w_hh"], params["b"]
    h = jnp.zeros((B, H), jnp.float32)
    c = jnp.zeros((B, H), jnp.float32)
    for t in range(T):
        gates = x[:, t, :] @ w_ih + h @ w_hh + b
        i = jax.nn.sigmoid(gates[:, :H])
        f = jax.nn.sigmoid(gates[:, H:2 * H])
        g = jnp.tanh(gates[:, 2 * H:3 * H])
        o = jax.nn.sigmoid(gates[:, 3 * H:])
        c = f * c + i * g
        h = o * jnp.tanh(c)
    hid = jnp.maximum(h @ params["w_fc1"] + params["b_fc1"], 0.0)
    return hid @ params["w_fc2"] + params["b_fc2"]


if __name__ == "__main__":
    key = jax.random.PRNGKey(0)
    k_x, k_p = jax.random.split(key)

    # Small shapes consistent with the module: batch=2, seq=8, input_size=63,
    # hidden_size=128, num_classes=5 (synthetic label-encoder size).
    B, T, F, H, C = 2, 8, 63, 128, 5

    x = jax.random.normal(k_x, (B, T, F), dtype=jnp.float32)
    params = init_params(k_p, input_size=F, hidden_size=H, num_classes=C)
    prepped = prepare_params(params)

    logits = gesture_lstm_forward(x, prepped, num_classes=C)
    jax.block_until_ready(logits)
    assert logits.shape == (B, C)

    # Correctness vs. an f32 pure-JAX reference (bf16 MXU operands => loose tol).
    ref = _reference_forward(x, params)
    assert jnp.allclose(logits, ref, atol=5e-2, rtol=5e-2)

    print("KERNEL_OK")
</pallas_src>

<mosaic_0001>
module attributes {stable_mosaic.version = 11 : i64} {
  func.func @_gesture_lstm_kernel(%arg0: memref<64x128xbf16, #tpu.memory_space<vmem>>, %arg1: memref<128x512xbf16, #tpu.memory_space<vmem>>, %arg2: memref<128x512xbf16, #tpu.memory_space<vmem>>, %arg3: memref<1x512xf32, #tpu.memory_space<vmem>>, %arg4: memref<128x128xbf16, #tpu.memory_space<vmem>>, %arg5: memref<1x128xf32, #tpu.memory_space<vmem>>, %arg6: memref<128x128xbf16, #tpu.memory_space<vmem>>, %arg7: memref<1x128xf32, #tpu.memory_space<vmem>>, %arg8: memref<8x128xf32, #tpu.memory_space<vmem>>) attributes {dimension_semantics = [], scalar_prefetch = 0 : i64, scratch_operands = 0 : i64, tpu.core_type = #tpu.core_type<tc>} {
    %c0 = arith.constant 0 : index
    %c0_0 = arith.constant 0 : index
    %0 = vector.load %arg2[%c0, %c0_0] : memref<128x512xbf16, #tpu.memory_space<vmem>>, vector<128x512xbf16>
    %c0_1 = arith.constant 0 : index
    %c0_2 = arith.constant 0 : index
    %1 = vector.load %arg3[%c0_1, %c0_2] : memref<1x512xf32, #tpu.memory_space<vmem>>, vector<1x512xf32>
    %c0_3 = arith.constant 0 : index
    %c0_4 = arith.constant 0 : index
    %2 = vector.load %arg0[%c0_3, %c0_4] : memref<64x128xbf16, #tpu.memory_space<vmem>>, vector<64x128xbf16>
    %c0_5 = arith.constant 0 : index
    %c0_6 = arith.constant 0 : index
    %3 = vector.load %arg1[%c0_5, %c0_6] : memref<128x512xbf16, #tpu.memory_space<vmem>>, vector<128x512xbf16>
    %cst = arith.constant dense<0.000000e+00> : vector<64x512xf32>
    %4 = tpu.matmul %2, %3, %cst {dimension_numbers = #tpu.dot_dimension_numbers<[1], [0], [0], [1], [0, 0, 1, 1], [], []>} : vector<64x128xbf16>, vector<128x512xbf16>, vector<64x512xf32> -> vector<64x512xf32>
    %5 = vector.broadcast %1 : vector<1x512xf32> to vector<64x512xf32>
    %6 = arith.addf %4, %5 : vector<64x512xf32>
    %cst_7 = arith.constant 0.000000e+00 : f32
    %7 = vector.broadcast %cst_7 : f32 to vector<8x128xf32>
    %cst_8 = arith.constant 0.000000e+00 : f32
    %8 = vector.broadcast %cst_8 : f32 to vector<8x128xf32>
    %9 = vector.extract_strided_slice %6 {offsets = [0, 0], sizes = [8, 512], strides = [1, 1]} : vector<64x512xf32> to vector<8x512xf32>
    %10 = arith.truncf %7 : vector<8x128xf32> to vector<8x128xbf16>
    %cst_9 = arith.constant dense<0.000000e+00> : vector<8x512xf32>
    %11 = tpu.matmul %10, %0, %cst_9 {dimension_numbers = #tpu.dot_dimension_numbers<[1], [0], [0], [1], [0, 0, 1, 1], [], []>} : vector<8x128xbf16>, vector<128x512xbf16>, vector<8x512xf32> -> vector<8x512xf32>
    %12 = arith.addf %11, %9 : vector<8x512xf32>
    %13 = vector.extract_strided_slice %12 {offsets = [0, 0], sizes = [8, 256], strides = [1, 1]} : vector<8x512xf32> to vector<8x256xf32>
    %14 = arith.negf %13 : vector<8x256xf32>
    %15 = math.exp %14 : vector<8x256xf32>
    %cst_10 = arith.constant 1.000000e+00 : f32
    %16 = vector.broadcast %cst_10 : f32 to vector<8x256xf32>
    %17 = arith.addf %16, %15 : vector<8x256xf32>
    %18 = arith.divf %16, %17 : vector<8x256xf32>
    %19 = vector.extract_strided_slice %12 {offsets = [0, 384], sizes = [8, 128], strides = [1, 1]} : vector<8x512xf32> to vector<8x128xf32>
    %20 = math.tanh %19 : vector<8x128xf32>
    %21 = vector.extract_strided_slice %12 {offsets = [0, 256], sizes = [8, 128], strides = [1, 1]} : vector<8x512xf32> to vector<8x128xf32>
    %22 = arith.negf %21 : vector<8x128xf32>
    %23 = math.exp %22 : vector<8x128xf32>
    %cst_11 = arith.constant 1.000000e+00 : f32
    %24 = vector.broadcast %cst_11 : f32 to vector<8x128xf32>
    %25 = arith.addf %24, %23 : vector<8x128xf32>
    %26 = arith.divf %24, %25 : vector<8x128xf32>
    %27 = vector.extract_strided_slice %18 {offsets = [0, 128], sizes = [8, 128], strides = [1, 1]} : vector<8x256xf32> to vector<8x128xf32>
    %28 = arith.mulf %27, %8 : vector<8x128xf32>
    %29 = vector.extract_strided_slice %18 {offsets = [0, 0], sizes = [8, 128], strides = [1, 1]} : vector<8x256xf32> to vector<8x128xf32>
    %30 = arith.mulf %29, %20 : vector<8x128xf32>
    %31 = arith.addf %28, %30 : vector<8x128xf32>
    %32 = math.tanh %31 : vector<8x128xf32>
    %33 = arith.mulf %26, %32 : vector<8x128xf32>
    %34 = vector.extract_strided_slice %6 {offsets = [8, 0], sizes = [8, 512], strides = [1, 1]} : vector<64x512xf32> to vector<8x512xf32>
    %35 = arith.truncf %33 : vector<8x128xf32> to vector<8x128xbf16>
    %cst_12 = arith.constant dense<0.000000e+00> : vector<8x512xf32>
    %36 = tpu.matmul %35, %0, %cst_12 {dimension_numbers = #tpu.dot_dimension_numbers<[1], [0], [0], [1], [0, 0, 1, 1], [], []>} : vector<8x128xbf16>, vector<128x512xbf16>, vector<8x512xf32> -> vector<8x512xf32>
    %37 = arith.addf %36, %34 : vector<8x512xf32>
    %38 = vector.extract_strided_slice %37 {offsets = [0, 0], sizes = [8, 256], strides = [1, 1]} : vector<8x512xf32> to vector<8x256xf32>
    %39 = arith.negf %38 : vector<8x256xf32>
    %40 = math.exp %39 : vector<8x256xf32>
    %cst_13 = arith.constant 1.000000e+00 : f32
    %41 = vector.broadcast %cst_13 : f32 to vector<8x256xf32>
    %42 = arith.addf %41, %40 : vector<8x256xf32>
    %43 = arith.divf %41, %42 : vector<8x256xf32>
    %44 = vector.extract_strided_slice %37 {offsets = [0, 384], sizes = [8, 128], strides = [1, 1]} : vector<8x512xf32> to vector<8x128xf32>
    %45 = math.tanh %44 : vector<8x128xf32>
    %46 = vector.extract_strided_slice %37 {offsets = [0, 256], sizes = [8, 128], strides = [1, 1]} : vector<8x512xf32> to vector<8x128xf32>
    %47 = arith.negf %46 : vector<8x128xf32>
    %48 = math.exp %47 : vector<8x128xf32>
    %cst_14 = arith.constant 1.000000e+00 : f32
    %49 = vector.broadcast %cst_14 : f32 to vector<8x128xf32>
    %50 = arith.addf %49, %48 : vector<8x128xf32>
    %51 = arith.divf %49, %50 : vector<8x128xf32>
    %52 = vector.extract_strided_slice %43 {offsets = [0, 128], sizes = [8, 128], strides = [1, 1]} : vector<8x256xf32> to vector<8x128xf32>
    %53 = arith.mulf %52, %31 : vector<8x128xf32>
    %54 = vector.extract_strided_slice %43 {offsets = [0, 0], sizes = [8, 128], strides = [1, 1]} : vector<8x256xf32> to vector<8x128xf32>
    %55 = arith.mulf %54, %45 : vector<8x128xf32>
    %56 = arith.addf %53, %55 : vector<8x128xf32>
    %57 = math.tanh %56 : vector<8x128xf32>
    %58 = arith.mulf %51, %57 : vector<8x128xf32>
    %59 = vector.extract_strided_slice %6 {offsets = [16, 0], sizes = [8, 512], strides = [1, 1]} : vector<64x512xf32> to vector<8x512xf32>
    %60 = arith.truncf %58 : vector<8x128xf32> to vector<8x128xbf16>
    %cst_15 = arith.constant dense<0.000000e+00> : vector<8x512xf32>
    %61 = tpu.matmul %60, %0, %cst_15 {dimension_numbers = #tpu.dot_dimension_numbers<[1], [0], [0], [1], [0, 0, 1, 1], [], []>} : vector<8x128xbf16>, vector<128x512xbf16>, vector<8x512xf32> -> vector<8x512xf32>
    %62 = arith.addf %61, %59 : vector<8x512xf32>
    %63 = vector.extract_strided_slice %62 {offsets = [0, 0], sizes = [8, 256], strides = [1, 1]} : vector<8x512xf32> to vector<8x256xf32>
    %64 = arith.negf %63 : vector<8x256xf32>
    %65 = math.exp %64 : vector<8x256xf32>
    %cst_16 = arith.constant 1.000000e+00 : f32
    %66 = vector.broadcast %cst_16 : f32 to vector<8x256xf32>
    %67 = arith.addf %66, %65 : vector<8x256xf32>
    %68 = arith.divf %66, %67 : vector<8x256xf32>
    %69 = vector.extract_strided_slice %62 {offsets = [0, 384], sizes = [8, 128], strides = [1, 1]} : vector<8x512xf32> to vector<8x128xf32>
    %70 = math.tanh %69 : vector<8x128xf32>
    %71 = vector.extract_strided_slice %62 {offsets = [0, 256], sizes = [8, 128], strides = [1, 1]} : vector<8x512xf32> to vector<8x128xf32>
    %72 = arith.negf %71 : vector<8x128xf32>
    %73 = math.exp %72 : vector<8x128xf32>
    %cst_17 = arith.constant 1.000000e+00 : f32
    %74 = vector.broadcast %cst_17 : f32 to vector<8x128xf32>
    %75 = arith.addf %74, %73 : vector<8x128xf32>
    %76 = arith.divf %74, %75 : vector<8x128xf32>
    %77 = vector.extract_strided_slice %68 {offsets = [0, 128], sizes = [8, 128], strides = [1, 1]} : vector<8x256xf32> to vector<8x128xf32>
    %78 = arith.mulf %77, %56 : vector<8x128xf32>
    %79 = vector.extract_strided_slice %68 {offsets = [0, 0], sizes = [8, 128], strides = [1, 1]} : vector<8x256xf32> to vector<8x128xf32>
    %80 = arith.mulf %79, %70 : vector<8x128xf32>
    %81 = arith.addf %78, %80 : vector<8x128xf32>
    %82 = math.tanh %81 : vector<8x128xf32>
    %83 = arith.mulf %76, %82 : vector<8x128xf32>
    %84 = vector.extract_strided_slice %6 {offsets = [24, 0], sizes = [8, 512], strides = [1, 1]} : vector<64x512xf32> to vector<8x512xf32>
    %85 = arith.truncf %83 : vector<8x128xf32> to vector<8x128xbf16>
    %cst_18 = arith.constant dense<0.000000e+00> : vector<8x512xf32>
    %86 = tpu.matmul %85, %0, %cst_18 {dimension_numbers = #tpu.dot_dimension_numbers<[1], [0], [0], [1], [0, 0, 1, 1], [], []>} : vector<8x128xbf16>, vector<128x512xbf16>, vector<8x512xf32> -> vector<8x512xf32>
    %87 = arith.addf %86, %84 : vector<8x512xf32>
    %88 = vector.extract_strided_slice %87 {offsets = [0, 0], sizes = [8, 256], strides = [1, 1]} : vector<8x512xf32> to vector<8x256xf32>
    %89 = arith.negf %88 : vector<8x256xf32>
    %90 = math.exp %89 : vector<8x256xf32>
    %cst_19 = arith.constant 1.000000e+00 : f32
    %91 = vector.broadcast %cst_19 : f32 to vector<8x256xf32>
    %92 = arith.addf %91, %90 : vector<8x256xf32>
    %93 = arith.divf %91, %92 : vector<8x256xf32>
    %94 = vector.extract_strided_slice %87 {offsets = [0, 384], sizes = [8, 128], strides = [1, 1]} : vector<8x512xf32> to vector<8x128xf32>
    %95 = math.tanh %94 : vector<8x128xf32>
    %96 = vector.extract_strided_slice %87 {offsets = [0, 256], sizes = [8, 128], strides = [1, 1]} : vector<8x512xf32> to vector<8x128xf32>
    %97 = arith.negf %96 : vector<8x128xf32>
    %98 = math.exp %97 : vector<8x128xf32>
    %cst_20 = arith.constant 1.000000e+00 : f32
    %99 = vector.broadcast %cst_20 : f32 to vector<8x128xf32>
    %100 = arith.addf %99, %98 : vector<8x128xf32>
    %101 = arith.divf %99, %100 : vector<8x128xf32>
    %102 = vector.extract_strided_slice %93 {offsets = [0, 128], sizes = [8, 128], strides = [1, 1]} : vector<8x256xf32> to vector<8x128xf32>
    %103 = arith.mulf %102, %81 : vector<8x128xf32>
    %104 = vector.extract_strided_slice %93 {offsets = [0, 0], sizes = [8, 128], strides = [1, 1]} : vector<8x256xf32> to vector<8x128xf32>
    %105 = arith.mulf %104, %95 : vector<8x128xf32>
    %106 = arith.addf %103, %105 : vector<8x128xf32>
    %107 = math.tanh %106 : vector<8x128xf32>
    %108 = arith.mulf %101, %107 : vector<8x128xf32>
    %109 = vector.extract_strided_slice %6 {offsets = [32, 0], sizes = [8, 512], strides = [1, 1]} : vector<64x512xf32> to vector<8x512xf32>
    %110 = arith.truncf %108 : vector<8x128xf32> to vector<8x128xbf16>
    %cst_21 = arith.constant dense<0.000000e+00> : vector<8x512xf32>
    %111 = tpu.matmul %110, %0, %cst_21 {dimension_numbers = #tpu.dot_dimension_numbers<[1], [0], [0], [1], [0, 0, 1, 1], [], []>} : vector<8x128xbf16>, vector<128x512xbf16>, vector<8x512xf32> -> vector<8x512xf32>
    %112 = arith.addf %111, %109 : vector<8x512xf32>
    %113 = vector.extract_strided_slice %112 {offsets = [0, 0], sizes = [8, 256], strides = [1, 1]} : vector<8x512xf32> to vector<8x256xf32>
    %114 = arith.negf %113 : vector<8x256xf32>
    %115 = math.exp %114 : vector<8x256xf32>
    %cst_22 = arith.constant 1.000000e+00 : f32
    %116 = vector.broadcast %cst_22 : f32 to vector<8x256xf32>
    %117 = arith.addf %116, %115 : vector<8x256xf32>
    %118 = arith.divf %116, %117 : vector<8x256xf32>
    %119 = vector.extract_strided_slice %112 {offsets = [0, 384], sizes = [8, 128], strides = [1, 1]} : vector<8x512xf32> to vector<8x128xf32>
    %120 = math.tanh %119 : vector<8x128xf32>
    %121 = vector.extract_strided_slice %112 {offsets = [0, 256], sizes = [8, 128], strides = [1, 1]} : vector<8x512xf32> to vector<8x128xf32>
    %122 = arith.negf %121 : vector<8x128xf32>
    %123 = math.exp %122 : vector<8x128xf32>
    %cst_23 = arith.constant 1.000000e+00 : f32
    %124 = vector.broadcast %cst_23 : f32 to vector<8x128xf32>
    %125 = arith.addf %124, %123 : vector<8x128xf32>
    %126 = arith.divf %124, %125 : vector<8x128xf32>
    %127 = vector.extract_strided_slice %118 {offsets = [0, 128], sizes = [8, 128], strides = [1, 1]} : vector<8x256xf32> to vector<8x128xf32>
    %128 = arith.mulf %127, %106 : vector<8x128xf32>
    %129 = vector.extract_strided_slice %118 {offsets = [0, 0], sizes = [8, 128], strides = [1, 1]} : vector<8x256xf32> to vector<8x128xf32>
    %130 = arith.mulf %129, %120 : vector<8x128xf32>
    %131 = arith.addf %128, %130 : vector<8x128xf32>
    %132 = math.tanh %131 : vector<8x128xf32>
    %133 = arith.mulf %126, %132 : vector<8x128xf32>
    %134 = vector.extract_strided_slice %6 {offsets = [40, 0], sizes = [8, 512], strides = [1, 1]} : vector<64x512xf32> to vector<8x512xf32>
    %135 = arith.truncf %133 : vector<8x128xf32> to vector<8x128xbf16>
    %cst_24 = arith.constant dense<0.000000e+00> : vector<8x512xf32>
    %136 = tpu.matmul %135, %0, %cst_24 {dimension_numbers = #tpu.dot_dimension_numbers<[1], [0], [0], [1], [0, 0, 1, 1], [], []>} : vector<8x128xbf16>, vector<128x512xbf16>, vector<8x512xf32> -> vector<8x512xf32>
    %137 = arith.addf %136, %134 : vector<8x512xf32>
    %138 = vector.extract_strided_slice %137 {offsets = [0, 0], sizes = [8, 256], strides = [1, 1]} : vector<8x512xf32> to vector<8x256xf32>
    %139 = arith.negf %138 : vector<8x256xf32>
    %140 = math.exp %139 : vector<8x256xf32>
    %cst_25 = arith.constant 1.000000e+00 : f32
    %141 = vector.broadcast %cst_25 : f32 to vector<8x256xf32>
    %142 = arith.addf %141, %140 : vector<8x256xf32>
    %143 = arith.divf %141, %142 : vector<8x256xf32>
    %144 = vector.extract_strided_slice %137 {offsets = [0, 384], sizes = [8, 128], strides = [1, 1]} : vector<8x512xf32> to vector<8x128xf32>
    %145 = math.tanh %144 : vector<8x128xf32>
    %146 = vector.extract_strided_slice %137 {offsets = [0, 256], sizes = [8, 128], strides = [1, 1]} : vector<8x512xf32> to vector<8x128xf32>
    %147 = arith.negf %146 : vector<8x128xf32>
    %148 = math.exp %147 : vector<8x128xf32>
    %cst_26 = arith.constant 1.000000e+00 : f32
    %149 = vector.broadcast %cst_26 : f32 to vector<8x128xf32>
    %150 = arith.addf %149, %148 : vector<8x128xf32>
    %151 = arith.divf %149, %150 : vector<8x128xf32>
    %152 = vector.extract_strided_slice %143 {offsets = [0, 128], sizes = [8, 128], strides = [1, 1]} : vector<8x256xf32> to vector<8x128xf32>
    %153 = arith.mulf %152, %131 : vector<8x128xf32>
    %154 = vector.extract_strided_slice %143 {offsets = [0, 0], sizes = [8, 128], strides = [1, 1]} : vector<8x256xf32> to vector<8x128xf32>
    %155 = arith.mulf %154, %145 : vector<8x128xf32>
    %156 = arith.addf %153, %155 : vector<8x128xf32>
    %157 = math.tanh %156 : vector<8x128xf32>
    %158 = arith.mulf %151, %157 : vector<8x128xf32>
    %159 = vector.extract_strided_slice %6 {offsets = [48, 0], sizes = [8, 512], strides = [1, 1]} : vector<64x512xf32> to vector<8x512xf32>
    %160 = arith.truncf %158 : vector<8x128xf32> to vector<8x128xbf16>
    %cst_27 = arith.constant dense<0.000000e+00> : vector<8x512xf32>
    %161 = tpu.matmul %160, %0, %cst_27 {dimension_numbers = #tpu.dot_dimension_numbers<[1], [0], [0], [1], [0, 0, 1, 1], [], []>} : vector<8x128xbf16>, vector<128x512xbf16>, vector<8x512xf32> -> vector<8x512xf32>
    %162 = arith.addf %161, %159 : vector<8x512xf32>
    %163 = vector.extract_strided_slice %162 {offsets = [0, 0], sizes = [8, 256], strides = [1, 1]} : vector<8x512xf32> to vector<8x256xf32>
    %164 = arith.negf %163 : vector<8x256xf32>
    %165 = math.exp %164 : vector<8x256xf32>
    %cst_28 = arith.constant 1.000000e+00 : f32
    %166 = vector.broadcast %cst_28 : f32 to vector<8x256xf32>
    %167 = arith.addf %166, %165 : vector<8x256xf32>
    %168 = arith.divf %166, %167 : vector<8x256xf32>
    %169 = vector.extract_strided_slice %162 {offsets = [0, 384], sizes = [8, 128], strides = [1, 1]} : vector<8x512xf32> to vector<8x128xf32>
    %170 = math.tanh %169 : vector<8x128xf32>
    %171 = vector.extract_strided_slice %162 {offsets = [0, 256], sizes = [8, 128], strides = [1, 1]} : vector<8x512xf32> to vector<8x128xf32>
    %172 = arith.negf %171 : vector<8x128xf32>
    %173 = math.exp %172 : vector<8x128xf32>
    %cst_29 = arith.constant 1.000000e+00 : f32
    %174 = vector.broadcast %cst_29 : f32 to vector<8x128xf32>
    %175 = arith.addf %174, %173 : vector<8x128xf32>
    %176 = arith.divf %174, %175 : vector<8x128xf32>
    %177 = vector.extract_strided_slice %168 {offsets = [0, 128], sizes = [8, 128], strides = [1, 1]} : vector<8x256xf32> to vector<8x128xf32>
    %178 = arith.mulf %177, %156 : vector<8x128xf32>
    %179 = vector.extract_strided_slice %168 {offsets = [0, 0], sizes = [8, 128], strides = [1, 1]} : vector<8x256xf32> to vector<8x128xf32>
    %180 = arith.mulf %179, %170 : vector<8x128xf32>
    %181 = arith.addf %178, %180 : vector<8x128xf32>
    %182 = math.tanh %181 : vector<8x128xf32>
    %183 = arith.mulf %176, %182 : vector<8x128xf32>
    %184 = vector.extract_strided_slice %6 {offsets = [56, 0], sizes = [8, 512], strides = [1, 1]} : vector<64x512xf32> to vector<8x512xf32>
    %185 = arith.truncf %183 : vector<8x128xf32> to vector<8x128xbf16>
    %cst_30 = arith.constant dense<0.000000e+00> : vector<8x512xf32>
    %186 = tpu.matmul %185, %0, %cst_30 {dimension_numbers = #tpu.dot_dimension_numbers<[1], [0], [0], [1], [0, 0, 1, 1], [], []>} : vector<8x128xbf16>, vector<128x512xbf16>, vector<8x512xf32> -> vector<8x512xf32>
    %187 = arith.addf %186, %184 : vector<8x512xf32>
    %188 = vector.extract_strided_slice %187 {offsets = [0, 0], sizes = [8, 256], strides = [1, 1]} : vector<8x512xf32> to vector<8x256xf32>
    %189 = arith.negf %188 : vector<8x256xf32>
    %190 = math.exp %189 : vector<8x256xf32>
    %cst_31 = arith.constant 1.000000e+00 : f32
    %191 = vector.broadcast %cst_31 : f32 to vector<8x256xf32>
    %192 = arith.addf %191, %190 : vector<8x256xf32>
    %193 = arith.divf %191, %192 : vector<8x256xf32>
    %194 = vector.extract_strided_slice %187 {offsets = [0, 384], sizes = [8, 128], strides = [1, 1]} : vector<8x512xf32> to vector<8x128xf32>
    %195 = math.tanh %194 : vector<8x128xf32>
    %196 = vector.extract_strided_slice %187 {offsets = [0, 256], sizes = [8, 128], strides = [1, 1]} : vector<8x512xf32> to vector<8x128xf32>
    %197 = arith.negf %196 : vector<8x128xf32>
    %198 = math.exp %197 : vector<8x128xf32>
    %cst_32 = arith.constant 1.000000e+00 : f32
    %199 = vector.broadcast %cst_32 : f32 to vector<8x128xf32>
    %200 = arith.addf %199, %198 : vector<8x128xf32>
    %201 = arith.divf %199, %200 : vector<8x128xf32>
    %202 = vector.extract_strided_slice %193 {offsets = [0, 128], sizes = [8, 128], strides = [1, 1]} : vector<8x256xf32> to vector<8x128xf32>
    %203 = arith.mulf %202, %181 : vector<8x128xf32>
    %204 = vector.extract_strided_slice %193 {offsets = [0, 0], sizes = [8, 128], strides = [1, 1]} : vector<8x256xf32> to vector<8x128xf32>
    %205 = arith.mulf %204, %195 : vector<8x128xf32>
    %206 = arith.addf %203, %205 : vector<8x128xf32>
    %207 = math.tanh %206 : vector<8x128xf32>
    %208 = arith.mulf %201, %207 : vector<8x128xf32>
    %209 = arith.truncf %208 : vector<8x128xf32> to vector<8x128xbf16>
    %c0_33 = arith.constant 0 : index
    %c0_34 = arith.constant 0 : index
    %210 = vector.load %arg4[%c0_33, %c0_34] : memref<128x128xbf16, #tpu.memory_space<vmem>>, vector<128x128xbf16>
    %cst_35 = arith.constant dense<0.000000e+00> : vector<8x128xf32>
    %211 = tpu.matmul %209, %210, %cst_35 {dimension_numbers = #tpu.dot_dimension_numbers<[1], [0], [0], [1], [0, 0, 1, 1], [], []>} : vector<8x128xbf16>, vector<128x128xbf16>, vector<8x128xf32> -> vector<8x128xf32>
    %c0_36 = arith.constant 0 : index
    %c0_37 = arith.constant 0 : index
    %212 = vector.load %arg5[%c0_36, %c0_37] : memref<1x128xf32, #tpu.memory_space<vmem>>, vector<1x128xf32>
    %213 = vector.broadcast %212 : vector<1x128xf32> to vector<8x128xf32>
    %214 = arith.addf %211, %213 : vector<8x128xf32>
    %cst_38 = arith.constant 0.000000e+00 : f32
    %215 = vector.broadcast %cst_38 : f32 to vector<8x128xf32>
    %216 = arith.maximumf %214, %215 : vector<8x128xf32>
    %217 = arith.truncf %216 : vector<8x128xf32> to vector<8x128xbf16>
    %c0_39 = arith.constant 0 : index
    %c0_40 = arith.constant 0 : index
    %218 = vector.load %arg6[%c0_39, %c0_40] : memref<128x128xbf16, #tpu.memory_space<vmem>>, vector<128x128xbf16>
    %cst_41 = arith.constant dense<0.000000e+00> : vector<8x128xf32>
    %219 = tpu.matmul %217, %218, %cst_41 {dimension_numbers = #tpu.dot_dimension_numbers<[1], [0], [0], [1], [0, 0, 1, 1], [], []>} : vector<8x128xbf16>, vector<128x128xbf16>, vector<8x128xf32> -> vector<8x128xf32>
    %c0_42 = arith.constant 0 : index
    %c0_43 = arith.constant 0 : index
    %220 = vector.load %arg7[%c0_42, %c0_43] : memref<1x128xf32, #tpu.memory_space<vmem>>, vector<1x128xf32>
    %221 = vector.broadcast %220 : vector<1x128xf32> to vector<8x128xf32>
    %222 = arith.addf %219, %221 : vector<8x128xf32>
    %c0_44 = arith.constant 0 : index
    %c0_45 = arith.constant 0 : index
    %223 = vector.load %arg8[%c0_44, %c0_45] : memref<8x128xf32, #tpu.memory_space<vmem>>, vector<8x128xf32>
    tpu.vector_store %arg8[%c0_44, %c0_45], %222 {strides = array<i32>} : memref<8x128xf32, #tpu.memory_space<vmem>>, vector<8x128xf32>,
    return
  }
}

</mosaic_0001>

<llo_original>
// kernel: gesture_lstm_forward.1
$region0: #{gesture_lstm_forward.1}
  #allocation0 [shape = 'u32[]', space=smem, size = 0x4, offset = 0x4, fixed_abs, tag = 'smem constant byte address 0x4 - core index']
  #allocation1 [shape = 'u32[72,128]{1,0:T(1,128)}', space=vmem, size = 0x9000, scoped, tag = 'internal scratch']
  %s0 = inlined_call_operand.vmem [shape: bf16[64,128], index: 0, kind: input, shape index: {}]
  %s1 = inlined_call_operand.hbm [shape: bf16[128,512], index: 1, kind: input, shape index: {}]
  %s2 = inlined_call_operand.hbm [shape: bf16[128,512], index: 2, kind: input, shape index: {}]
  %s3 = inlined_call_operand.hbm [shape: f32[1,512], index: 3, kind: input, shape index: {}]
  %s4 = inlined_call_operand.vmem [shape: bf16[128,128], index: 4, kind: input, shape index: {}]
  %s5 = inlined_call_operand.vmem [shape: f32[1,128], index: 5, kind: input, shape index: {}]
  %s6 = inlined_call_operand.vmem [shape: bf16[128,128], index: 6, kind: input, shape index: {}]
  %s7 = inlined_call_operand.hbm [shape: f32[1,128], index: 7, kind: input, shape index: {}]
  %s8 = inlined_call_operand.vmem [shape: f32[8,128], index: 8, kind: output, shape index: {}]
  %s9 = sld [smem:[#allocation0]]
  $region58: #{gesture_lstm_forward.1} parent=0
    _
  %s11 = ssub.s32 1, %s9
  %s12 = scalar_select 0, %s11, %s9
  $region1: #{gesture_lstm_forward.1} parent=0
    #allocation2 [shape = 'u8[131072]{0}', space=vmem, size = 0x20000, scoped, tag = 'input window, operand 1, single buffered']
    #allocation3 [shape = 's32[1]{0}', space=sflag, size = 0x4, scoped, tag = 'scoped memory for gesture_lstm_forward.1']
    #allocation4 [shape = 'u8[131072]{0}', space=vmem, size = 0x20000, scoped, tag = 'input window, operand 2, single buffered']
    #allocation5 [shape = 's32[1]{0}', space=sflag, size = 0x4, scoped, tag = 'scoped memory for gesture_lstm_forward.1']
    #allocation6 [shape = 'u8[2048]{0}', space=vmem, size = 0x800, scoped, tag = 'input window, operand 3, single buffered']
    #allocation7 [shape = 'u8[512]{0}', space=vmem, size = 0x400, scoped, tag = 'input window, operand 7, single buffered']
    #allocation8 [shape = 's32[1]{0}', space=sflag, size = 0x4, scoped, tag = 'scoped memory for gesture_lstm_forward.1']
    %13 = vsyncpa [#allocation3], 0
    %14 = vsyncpa [#allocation5], 0
    %15 = vsyncpa [#allocation8], 0
    // Predicated region
    $region2: #{gesture_lstm_forward.1} parent=1 // pred_check
      _
    $region3: #{gesture_lstm_forward.1} parent=1 // pred_check_branch
      %17 = sbr.rel (0) target = $region5
    $region4: #{gesture_lstm_forward.1} parent=1 // pred_region
      _
    $region5: #{gesture_lstm_forward.1} parent=1 // pred_fallthru
      _
    // Predicated region
    $region6: #{gesture_lstm_forward.1} parent=1 // pred_check
      _
    $region7: #{gesture_lstm_forward.1} parent=1 // pred_check_branch
      %19 = sbr.rel (0) target = $region9
    $region8: #{gesture_lstm_forward.1} parent=1 // pred_region
      %21 = vsyncadd [#allocation3], 0
      %s22 = sshll.u32 %s1, 4
      %s23 = int_to_ptr.hbm [resolvable:$true] %s22
      %s24 = sshll.u32 [#allocation2], 4
      %s25 = int_to_ptr.vmem [resolvable:$true] %s24
      %30 = dma.hbm_to_vmem [thread:$0]  %s23, 4096, %s25, [#allocation3], 256, 256, 16
    $region9: #{gesture_lstm_forward.1} parent=1 // pred_fallthru
      _
    // Predicated region
    $region10: #{gesture_lstm_forward.1} parent=1 // pred_check
      _
    $region11: #{gesture_lstm_forward.1} parent=1 // pred_check_branch
      %32 = sbr.rel (0) target = $region13
    $region12: #{gesture_lstm_forward.1} parent=1 // pred_region
      %34 = vsyncadd [#allocation5], 0
      %s35 = sshll.u32 %s2, 4
      %s36 = int_to_ptr.hbm [resolvable:$true] %s35
      %s37 = sshll.u32 [#allocation4], 4
      %s38 = int_to_ptr.vmem [resolvable:$true] %s37
      %43 = dma.hbm_to_vmem [thread:$0]  %s36, 4096, %s38, [#allocation5], 256, 256, 16
    $region13: #{gesture_lstm_forward.1} parent=1 // pred_fallthru
      _
    // Predicated region
    $region14: #{gesture_lstm_forward.1} parent=1 // pred_check
      _
    $region15: #{gesture_lstm_forward.1} parent=1 // pred_check_branch
      %45 = sbr.rel (0) target = $region17
    $region16: #{gesture_lstm_forward.1} parent=1 // pred_region
      %47 = vsyncadd [#allocation5], 0
      %s49 = sshll.u32 %s3, 4
      %s50 = int_to_ptr.hbm [resolvable:$true] %s49
      %s51 = sshll.u32 [#allocation6], 4
      %s52 = int_to_ptr.vmem [resolvable:$true] %s51
      %54 = dma.hbm_to_vmem [thread:$0]  %s50, 64, %s52, [#allocation5]
    $region17: #{gesture_lstm_forward.1} parent=1 // pred_fallthru
      _
    // Predicated region
    $region18: #{gesture_lstm_forward.1} parent=1 // pred_check
      _
    $region19: #{gesture_lstm_forward.1} parent=1 // pred_check_branch
      %56 = sbr.rel (0) target = $region21
    $region20: #{gesture_lstm_forward.1} parent=1 // pred_region
      _
    $region21: #{gesture_lstm_forward.1} parent=1 // pred_fallthru
      _
    // Predicated region
    $region22: #{gesture_lstm_forward.1} parent=1 // pred_check
      _
    $region23: #{gesture_lstm_forward.1} parent=1 // pred_check_branch
      %58 = sbr.rel (0) target = $region25
    $region24: #{gesture_lstm_forward.1} parent=1 // pred_region
      _
    $region25: #{gesture_lstm_forward.1} parent=1 // pred_fallthru
      _
    // Predicated region
    $region26: #{gesture_lstm_forward.1} parent=1 // pred_check
      _
    $region27: #{gesture_lstm_forward.1} parent=1 // pred_check_branch
      %60 = sbr.rel (0) target = $region29
    $region28: #{gesture_lstm_forward.1} parent=1 // pred_region
      _
    $region29: #{gesture_lstm_forward.1} parent=1 // pred_fallthru
      _
    // Predicated region
    $region30: #{gesture_lstm_forward.1} parent=1 // pred_check
      _
    $region31: #{gesture_lstm_forward.1} parent=1 // pred_check_branch
      %62 = sbr.rel (0) target = $region33
    $region32: #{gesture_lstm_forward.1} parent=1 // pred_region
      %64 = vsyncadd [#allocation8], 0
      %s66 = sshll.u32 %s7, 4
      %s67 = int_to_ptr.hbm [resolvable:$true] %s66
      %s68 = sshll.u32 [#allocation7], 4
      %s69 = int_to_ptr.vmem [resolvable:$true] %s68
      %71 = dma.hbm_to_vmem [thread:$0]  %s67, 16, %s69, [#allocation8]
    $region33: #{gesture_lstm_forward.1} parent=1 // pred_fallthru
      _
    // Predicated region
    $region34: #{gesture_lstm_forward.1} parent=1 // pred_check
      _
    $region35: #{gesture_lstm_forward.1} parent=1 // pred_check_branch
      %73 = sbr.rel (0) target = $region37
    $region36: #{gesture_lstm_forward.1} parent=1 // pred_region
      %75 = dma.done [#allocation3], 4096
    $region37: #{gesture_lstm_forward.1} parent=1 // pred_fallthru
      _
    // Predicated region
    $region38: #{gesture_lstm_forward.1} parent=1 // pred_check
      _
    $region39: #{gesture_lstm_forward.1} parent=1 // pred_check_branch
      %77 = sbr.rel (0) target = $region41
    $region40: #{gesture_lstm_forward.1} parent=1 // pred_region
      %79 = dma.done [#allocation5], 4096
    $region41: #{gesture_lstm_forward.1} parent=1 // pred_fallthru
      _
    // Predicated region
    $region42: #{gesture_lstm_forward.1} parent=1 // pred_check
      _
    $region43: #{gesture_lstm_forward.1} parent=1 // pred_check_branch
      %81 = sbr.rel (0) target = $region45
    $region44: #{gesture_lstm_forward.1} parent=1 // pred_region
      %83 = dma.done [#allocation5], 64
    $region45: #{gesture_lstm_forward.1} parent=1 // pred_fallthru
      _
    // Predicated region
    $region46: #{gesture_lstm_forward.1} parent=1 // pred_check
      _
    $region47: #{gesture_lstm_forward.1} parent=1 // pred_check_branch
      %85 = sbr.rel (0) target = $region49
    $region48: #{gesture_lstm_forward.1} parent=1 // pred_region
      %87 = dma.done [#allocation8], 16
    $region49: #{gesture_lstm_forward.1} parent=1 // pred_fallthru
      _
    %v89 = vld [vmem:[#allocation4] sm:$0xff]
    %v90 = vld [vmem:[#allocation4 + $0x8] sm:$0xff]
    %v91 = vld [vmem:[#allocation4 + $0x10] sm:$0xff]
    %v92 = vld [vmem:[#allocation4 + $0x18] sm:$0xff]
    %v93 = vld [vmem:[#allocation4 + $0x20] sm:$0xff]
    %v94 = vld [vmem:[#allocation4 + $0x28] sm:$0xff]
    %v95 = vld [vmem:[#allocation4 + $0x30] sm:$0xff]
    %v96 = vld [vmem:[#allocation4 + $0x38] sm:$0xff]
    %v97 = vld [vmem:[#allocation4 + $0x40] sm:$0xff]
    %v98 = vld [vmem:[#allocation4 + $0x48] sm:$0xff]
    %v99 = vld [vmem:[#allocation4 + $0x50] sm:$0xff]
    %v100 = vld [vmem:[#allocation4 + $0x58] sm:$0xff]
    %v101 = vld [vmem:[#allocation4 + $0x60] sm:$0xff]
    %v102 = vld [vmem:[#allocation4 + $0x68] sm:$0xff]
    %v103 = vld [vmem:[#allocation4 + $0x70] sm:$0xff]
    %v104 = vld [vmem:[#allocation4 + $0x78] sm:$0xff]
    %v105 = vld [vmem:[#allocation4 + $0x80] sm:$0xff]
    %v106 = vld [vmem:[#allocation4 + $0x88] sm:$0xff]
    %v107 = vld [vmem:[#allocation4 + $0x90] sm:$0xff]
    %v108 = vld [vmem:[#allocation4 + $0x98] sm:$0xff]
    %v109 = vld [vmem:[#allocation4 + $0xa0] sm:$0xff]
    %v110 = vld [vmem:[#allocation4 + $0xa8] sm:$0xff]
    %v111 = vld [vmem:[#allocation4 + $0xb0] sm:$0xff]
    %v112 = vld [vmem:[#allocation4 + $0xb8] sm:$0xff]
    %v113 = vld [vmem:[#allocation4 + $0xc0] sm:$0xff]
    %v114 = vld [vmem:[#allocation4 + $0xc8] sm:$0xff]
    %v115 = vld [vmem:[#allocation4 + $0xd0] sm:$0xff]
    %v116 = vld [vmem:[#allocation4 + $0xd8] sm:$0xff]
    %v117 = vld [vmem:[#allocation4 + $0xe0] sm:$0xff]
    %v118 = vld [vmem:[#allocation4 + $0xe8] sm:$0xff]
    %v119 = vld [vmem:[#allocation4 + $0xf0] sm:$0xff]
    %v120 = vld [vmem:[#allocation4 + $0xf8] sm:$0xff]
    %v121 = vld [vmem:[#allocation6] sm:$0xf]
    %v122 = vld [vmem:[%s0] sm:$0xf]
    %v123 = vld [vmem:[%s0 + $0x4] sm:$0xf]
    %v124 = vld [vmem:[%s0 + $0x8] sm:$0xf]
    %v125 = vld [vmem:[%s0 + $0xc] sm:$0xf]
    %v126 = vld [vmem:[%s0 + $0x10] sm:$0xf]
    %v127 = vld [vmem:[%s0 + $0x14] sm:$0xf]
    %v128 = vld [vmem:[%s0 + $0x18] sm:$0xf]
    %v129 = vld [vmem:[%s0 + $0x1c] sm:$0xf]
    %v130 = vld [vmem:[#allocation2] sm:$0xff]
    %v131 = vld [vmem:[#allocation2 + $0x8] sm:$0xff]
    %v132 = vld [vmem:[#allocation2 + $0x10] sm:$0xff]
    %v133 = vld [vmem:[#allocation2 + $0x18] sm:$0xff]
    %v134 = vld [vmem:[#allocation2 + $0x20] sm:$0xff]
    %v135 = vld [vmem:[#allocation2 + $0x28] sm:$0xff]
    %v136 = vld [vmem:[#allocation2 + $0x30] sm:$0xff]
    %v137 = vld [vmem:[#allocation2 + $0x38] sm:$0xff]
    %v138 = vld [vmem:[#allocation2 + $0x40] sm:$0xff]
    %v139 = vld [vmem:[#allocation2 + $0x48] sm:$0xff]
    %v140 = vld [vmem:[#allocation2 + $0x50] sm:$0xff]
    %v141 = vld [vmem:[#allocation2 + $0x58] sm:$0xff]
    %v142 = vld [vmem:[#allocation2 + $0x60] sm:$0xff]
    %v143 = vld [vmem:[#allocation2 + $0x68] sm:$0xff]
    %v144 = vld [vmem:[#allocation2 + $0x70] sm:$0xff]
    %v145 = vld [vmem:[#allocation2 + $0x78] sm:$0xff]
    %v146 = vld [vmem:[#allocation2 + $0x80] sm:$0xff]
    %v147 = vld [vmem:[#allocation2 + $0x88] sm:$0xff]
    %v148 = vld [vmem:[#allocation2 + $0x90] sm:$0xff]
    %v149 = vld [vmem:[#allocation2 + $0x98] sm:$0xff]
    %v150 = vld [vmem:[#allocation2 + $0xa0] sm:$0xff]
    %v151 = vld [vmem:[#allocation2 + $0xa8] sm:$0xff]
    %v152 = vld [vmem:[#allocation2 + $0xb0] sm:$0xff]
    %v153 = vld [vmem:[#allocation2 + $0xb8] sm:$0xff]
    %v154 = vld [vmem:[#allocation2 + $0xc0] sm:$0xff]
    %v155 = vld [vmem:[#allocation2 + $0xc8] sm:$0xff]
    %v156 = vld [vmem:[#allocation2 + $0xd0] sm:$0xff]
    %v157 = vld [vmem:[#allocation2 + $0xd8] sm:$0xff]
    %v158 = vld [vmem:[#allocation2 + $0xe0] sm:$0xff]
    %v159 = vld [vmem:[#allocation2 + $0xe8] sm:$0xff]
    %v160 = vld [vmem:[#allocation2 + $0xf0] sm:$0xff]
    %v161 = vld [vmem:[#allocation2 + $0xf8] sm:$0xff]
    %v163 = vperm.slane %v121, 0
    %v164 = vperm.slane %v121, 1
    %v165 = vperm.slane %v121, 2
    %v166 = vperm.slane %v121, 3
    %v179 = vunpack.c.l.b16 %v122
    %v180 = vunpack.c.l.b16 %v123
    %v181 = vunpack.c.l.b16 %v124
    %v182 = vunpack.c.l.b16 %v125
    %v183 = vunpack.c.l.b16 %v126
    %v184 = vunpack.c.l.b16 %v127
    %v185 = vunpack.c.l.b16 %v128
    %v186 = vunpack.c.l.b16 %v129
    %v187 = vpack.c.b16 %v180, %v179
    %v188 = vpack.c.b16 %v182, %v181
    %v189 = vpack.c.b16 %v184, %v183
    %v190 = vpack.c.b16 %v186, %v185
    %v227 = vunpack.c.l.b16 %v130
    %v228 = vunpack.c.h.b16 %v130
    %v229 = vunpack.c.l.b16 %v131
    %v230 = vunpack.c.h.b16 %v131
    %v231 = vunpack.c.l.b16 %v132
    %v232 = vunpack.c.h.b16 %v132
    %v233 = vunpack.c.l.b16 %v133
    %v234 = vunpack.c.h.b16 %v133
    %v235 = vunpack.c.l.b16 %v134
    %v236 = vunpack.c.h.b16 %v134
    %v237 = vunpack.c.l.b16 %v135
    %v238 = vunpack.c.h.b16 %v135
    %v239 = vunpack.c.l.b16 %v136
    %v240 = vunpack.c.h.b16 %v136
    %v241 = vunpack.c.l.b16 %v137
    %v242 = vunpack.c.h.b16 %v137
    %v243 = vunpack.c.l.b16 %v138
    %v244 = vunpack.c.h.b16 %v138
    %v245 = vunpack.c.l.b16 %v139
    %v246 = vunpack.c.h.b16 %v139
    %v247 = vunpack.c.l.b16 %v140
    %v248 = vunpack.c.h.b16 %v140
    %v249 = vunpack.c.l.b16 %v141
    %v250 = vunpack.c.h.b16 %v141
    %v251 = vunpack.c.l.b16 %v142
    %v252 = vunpack.c.h.b16 %v142
    %v253 = vunpack.c.l.b16 %v143
    %v254 = vunpack.c.h.b16 %v143
    %v255 = vunpack.c.l.b16 %v144
    %v256 = vunpack.c.h.b16 %v144
    %v257 = vunpack.c.l.b16 %v145
    %v258 = vunpack.c.h.b16 %v145
    %v259 = vunpack.c.l.b16 %v146
    %v260 = vunpack.c.h.b16 %v146
    %v261 = vunpack.c.l.b16 %v147
    %v262 = vunpack.c.h.b16 %v147
    %v263 = vunpack.c.l.b16 %v148
    %v264 = vunpack.c.h.b16 %v148
    %v265 = vunpack.c.l.b16 %v149
    %v266 = vunpack.c.h.b16 %v149
    %v267 = vunpack.c.l.b16 %v150
    %v268 = vunpack.c.h.b16 %v150
    %v269 = vunpack.c.l.b16 %v151
    %v270 = vunpack.c.h.b16 %v151
    %v271 = vunpack.c.l.b16 %v152
    %v272 = vunpack.c.h.b16 %v152
    %v273 = vunpack.c.l.b16 %v153
    %v274 = vunpack.c.h.b16 %v153
    %v275 = vunpack.c.l.b16 %v154
    %v276 = vunpack.c.h.b16 %v154
    %v277 = vunpack.c.l.b16 %v155
    %v278 = vunpack.c.h.b16 %v155
    %v279 = vunpack.c.l.b16 %v156
    %v280 = vunpack.c.h.b16 %v156
    %v281 = vunpack.c.l.b16 %v157
    %v282 = vunpack.c.h.b16 %v157
    %v283 = vunpack.c.l.b16 %v158
    %v284 = vunpack.c.h.b16 %v158
    %v285 = vunpack.c.l.b16 %v159
    %v286 = vunpack.c.h.b16 %v159
    %v287 = vunpack.c.l.b16 %v160
    %v288 = vunpack.c.h.b16 %v160
    %v289 = vunpack.c.l.b16 %v161
    %v290 = vunpack.c.h.b16 %v161
    %v291 = vpack.c.b16 %v231, %v227
    %v292 = vpack.c.b16 %v232, %v228
    %v293 = vpack.c.b16 %v233, %v229
    %v294 = vpack.c.b16 %v234, %v230
    %v295 = vpack.c.b16 %v239, %v235
    %v296 = vpack.c.b16 %v240, %v236
    %v297 = vpack.c.b16 %v241, %v237
    %v298 = vpack.c.b16 %v242, %v238
    %v299 = vpack.c.b16 %v247, %v243
    %v300 = vpack.c.b16 %v248, %v244
    %v301 = vpack.c.b16 %v249, %v245
    %v302 = vpack.c.b16 %v250, %v246
    %v303 = vpack.c.b16 %v255, %v251
    %v304 = vpack.c.b16 %v256, %v252
    %v305 = vpack.c.b16 %v257, %v253
    %v306 = vpack.c.b16 %v258, %v254
    %v307 = vpack.c.b16 %v263, %v259
    %v308 = vpack.c.b16 %v264, %v260
    %v309 = vpack.c.b16 %v265, %v261
    %v310 = vpack.c.b16 %v266, %v262
    %v311 = vpack.c.b16 %v271, %v267
    %v312 = vpack.c.b16 %v272, %v268
    %v313 = vpack.c.b16 %v273, %v269
    %v314 = vpack.c.b16 %v274, %v270
    %v315 = vpack.c.b16 %v279, %v275
    %v316 = vpack.c.b16 %v280, %v276
    %v317 = vpack.c.b16 %v281, %v277
    %v318 = vpack.c.b16 %v282, %v278
    %v319 = vpack.c.b16 %v287, %v283
    %v320 = vpack.c.b16 %v288, %v284
    %v321 = vpack.c.b16 %v289, %v285
    %v322 = vpack.c.b16 %v290, %v286
    %355 = vmatpush.bf16.msra.mxu0 %v319
    %356 = vmatpush.bf16.msra.mxu0 %v315
    %357 = vmatpush.bf16.msra.mxu0 %v311
    %358 = vmatpush.bf16.msra.mxu0 %v307
    %359 = vmatpush.bf16.msra.mxu0 %v303
    %360 = vmatpush.bf16.msra.mxu0 %v299
    %361 = vmatpush.bf16.msra.mxu0 %v295
    %362 = vmatpush.bf16.msra.mxu0 %v291
    %363 = vmatmul.bf16.gmra.mxu0 %v187
    %v364 = vpop.f32.mrf.mxu0
    %v365 = vadd.f32 %v163, %v364
    %v366 = vpop.f32.mrf.mxu0
    %v367 = vadd.f32 %v163, %v366
    %368 = vmatmul.bf16.gmra.mxu0 %v188
    %v369 = vpop.f32.mrf.mxu0
    %v370 = vadd.f32 %v163, %v369
    %v371 = vpop.f32.mrf.mxu0
    %v372 = vadd.f32 %v163, %v371
    %373 = vmatmul.bf16.gmra.mxu0 %v189
    %v374 = vpop.f32.mrf.mxu0
    %v375 = vadd.f32 %v163, %v374
    %v376 = vpop.f32.mrf.mxu0
    %v377 = vadd.f32 %v163, %v376
    %378 = vmatmul.bf16.gmra.mxu0 %v190
    %v379 = vpop.f32.mrf.mxu0
    %v380 = vadd.f32 %v163, %v379
    %v381 = vpop.f32.mrf.mxu0
    %v382 = vadd.f32 %v163, %v381
    %383 = vdwg.mxu0
    %384 = vmatpush.bf16.msra.mxu0 %v320
    %385 = vmatpush.bf16.msra.mxu0 %v316
    %386 = vmatpush.bf16.msra.mxu0 %v312
    %387 = vmatpush.bf16.msra.mxu0 %v308
    %388 = vmatpush.bf16.msra.mxu0 %v304
    %389 = vmatpush.bf16.msra.mxu0 %v300
    %390 = vmatpush.bf16.msra.mxu0 %v296
    %391 = vmatpush.bf16.msra.mxu0 %v292
    %392 = vmatmul.bf16.gmra.mxu0 %v187
    %v393 = vpop.f32.mrf.mxu0
    %v394 = vadd.f32 %v164, %v393
    %v395 = vpop.f32.mrf.mxu0
    %v396 = vadd.f32 %v164, %v395
    %397 = vmatmul.bf16.gmra.mxu0 %v188
    %v398 = vpop.f32.mrf.mxu0
    %v399 = vadd.f32 %v164, %v398
    %v400 = vpop.f32.mrf.mxu0
    %v401 = vadd.f32 %v164, %v400
    %402 = vmatmul.bf16.gmra.mxu0 %v189
    %v403 = vpop.f32.mrf.mxu0
    %v404 = vadd.f32 %v164, %v403
    %v405 = vpop.f32.mrf.mxu0
    %v406 = vadd.f32 %v164, %v405
    %407 = vmatmul.bf16.gmra.mxu0 %v190
    %v408 = vpop.f32.mrf.mxu0
    %v409 = vadd.f32 %v164, %v408
    %v410 = vpop.f32.mrf.mxu0
    %v411 = vadd.f32 %v164, %v410
    %412 = vdwg.mxu0
    %413 = vmatpush.bf16.msra.mxu0 %v321
    %414 = vmatpush.bf16.msra.mxu0 %v317
    %415 = vmatpush.bf16.msra.mxu0 %v313
    %416 = vmatpush.bf16.msra.mxu0 %v309
    %417 = vmatpush.bf16.msra.mxu0 %v305
    %418 = vmatpush.bf16.msra.mxu0 %v301
    %419 = vmatpush.bf16.msra.mxu0 %v297
    %420 = vmatpush.bf16.msra.mxu0 %v293
    %421 = vmatmul.bf16.gmra.mxu0 %v187
    %v422 = vpop.f32.mrf.mxu0
    %v423 = vadd.f32 %v165, %v422
    %v424 = vpop.f32.mrf.mxu0
    %v425 = vadd.f32 %v165, %v424
    %426 = vmatmul.bf16.gmra.mxu0 %v188
    %v427 = vpop.f32.mrf.mxu0
    %v428 = vadd.f32 %v165, %v427
    %v429 = vpop.f32.mrf.mxu0
    %v430 = vadd.f32 %v165, %v429
    %431 = vmatmul.bf16.gmra.mxu0 %v189
    %v432 = vpop.f32.mrf.mxu0
    %v433 = vadd.f32 %v165, %v432
    %v434 = vpop.f32.mrf.mxu0
    %v435 = vadd.f32 %v165, %v434
    %436 = vmatmul.bf16.gmra.mxu0 %v190
    %v437 = vpop.f32.mrf.mxu0
    %v438 = vadd.f32 %v165, %v437
    %v439 = vpop.f32.mrf.mxu0
    %v440 = vadd.f32 %v165, %v439
    %441 = vdwg.mxu0
    %442 = vmatpush.bf16.msra.mxu0 %v322
    %443 = vmatpush.bf16.msra.mxu0 %v318
    %444 = vmatpush.bf16.msra.mxu0 %v314
    %445 = vmatpush.bf16.msra.mxu0 %v310
    %446 = vmatpush.bf16.msra.mxu0 %v306
    %447 = vmatpush.bf16.msra.mxu0 %v302
    %448 = vmatpush.bf16.msra.mxu0 %v298
    %449 = vmatpush.bf16.msra.mxu0 %v294
    %450 = vmatmul.bf16.gmra.mxu0 %v187
    %v451 = vpop.f32.mrf.mxu0
    %v452 = vadd.f32 %v166, %v451
    %v453 = vpop.f32.mrf.mxu0
    %v454 = vadd.f32 %v166, %v453
    %455 = vmatmul.bf16.gmra.mxu0 %v188
    %v456 = vpop.f32.mrf.mxu0
    %v457 = vadd.f32 %v166, %v456
    %v458 = vpop.f32.mrf.mxu0
    %v459 = vadd.f32 %v166, %v458
    %460 = vmatmul.bf16.gmra.mxu0 %v189
    %v461 = vpop.f32.mrf.mxu0
    %v462 = vadd.f32 %v166, %v461
    %v463 = vpop.f32.mrf.mxu0
    %v464 = vadd.f32 %v166, %v463
    %465 = vmatmul.bf16.gmra.mxu0 %v190
    %v466 = vpop.f32.mrf.mxu0
    %v467 = vadd.f32 %v166, %v466
    %v468 = vpop.f32.mrf.mxu0
    %v469 = vadd.f32 %v166, %v468
    %470 = vdwg.mxu0
    %v503 = vunpack.c.l.b16 %v89
    %v504 = vunpack.c.h.b16 %v89
    %v505 = vunpack.c.l.b16 %v90
    %v506 = vunpack.c.h.b16 %v90
    %v507 = vunpack.c.l.b16 %v91
    %v508 = vunpack.c.h.b16 %v91
    %v509 = vunpack.c.l.b16 %v92
    %v510 = vunpack.c.h.b16 %v92
    %v511 = vunpack.c.l.b16 %v93
    %v512 = vunpack.c.h.b16 %v93
    %v513 = vunpack.c.l.b16 %v94
    %v514 = vunpack.c.h.b16 %v94
    %v515 = vunpack.c.l.b16 %v95
    %v516 = vunpack.c.h.b16 %v95
    %v517 = vunpack.c.l.b16 %v96
    %v518 = vunpack.c.h.b16 %v96
    %v519 = vunpack.c.l.b16 %v97
    %v520 = vunpack.c.h.b16 %v97
    %v521 = vunpack.c.l.b16 %v98
    %v522 = vunpack.c.h.b16 %v98
    %v523 = vunpack.c.l.b16 %v99
    %v524 = vunpack.c.h.b16 %v99
    %v525 = vunpack.c.l.b16 %v100
    %v526 = vunpack.c.h.b16 %v100
    %v527 = vunpack.c.l.b16 %v101
    %v528 = vunpack.c.h.b16 %v101
    %v529 = vunpack.c.l.b16 %v102
    %v530 = vunpack.c.h.b16 %v102
    %v531 = vunpack.c.l.b16 %v103
    %v532 = vunpack.c.h.b16 %v103
    %v533 = vunpack.c.l.b16 %v104
    %v534 = vunpack.c.h.b16 %v104
    %v535 = vunpack.c.l.b16 %v105
    %v536 = vunpack.c.h.b16 %v105
    %v537 = vunpack.c.l.b16 %v106
    %v538 = vunpack.c.h.b16 %v106
    %v539 = vunpack.c.l.b16 %v107
    %v540 = vunpack.c.h.b16 %v107
    %v541 = vunpack.c.l.b16 %v108
    %v542 = vunpack.c.h.b16 %v108
    %v543 = vunpack.c.l.b16 %v109
    %v544 = vunpack.c.h.b16 %v109
    %v545 = vunpack.c.l.b16 %v110
    %v546 = vunpack.c.h.b16 %v110
    %v547 = vunpack.c.l.b16 %v111
    %v548 = vunpack.c.h.b16 %v111
    %v549 = vunpack.c.l.b16 %v112
    %v550 = vunpack.c.h.b16 %v112
    %v551 = vunpack.c.l.b16 %v113
    %v552 = vunpack.c.h.b16 %v113
    %v553 = vunpack.c.l.b16 %v114
    %v554 = vunpack.c.h.b16 %v114
    %v555 = vunpack.c.l.b16 %v115
    %v556 = vunpack.c.h.b16 %v115
    %v557 = vunpack.c.l.b16 %v116
    %v558 = vunpack.c.h.b16 %v116
    %v559 = vunpack.c.l.b16 %v117
    %v560 = vunpack.c.h.b16 %v117
    %v561 = vunpack.c.l.b16 %v118
    %v562 = vunpack.c.h.b16 %v118
    %v563 = vunpack.c.l.b16 %v119
    %v564 = vunpack.c.h.b16 %v119
    %v565 = vunpack.c.l.b16 %v120
    %v566 = vunpack.c.h.b16 %v120
    %v567 = vpack.c.b16 %v507, %v503
    %v568 = vpack.c.b16 %v508, %v504
    %v569 = vpack.c.b16 %v509, %v505
    %v570 = vpack.c.b16 %v510, %v506
    %v571 = vpack.c.b16 %v515, %v511
    %v572 = vpack.c.b16 %v516, %v512
    %v573 = vpack.c.b16 %v517, %v513
    %v574 = vpack.c.b16 %v518, %v514
    %v575 = vpack.c.b16 %v523, %v519
    %v576 = vpack.c.b16 %v524, %v520
    %v577 = vpack.c.b16 %v525, %v521
    %v578 = vpack.c.b16 %v526, %v522
    %v579 = vpack.c.b16 %v531, %v527
    %v580 = vpack.c.b16 %v532, %v528
    %v581 = vpack.c.b16 %v533, %v529
    %v582 = vpack.c.b16 %v534, %v530
    %v583 = vpack.c.b16 %v539, %v535
    %v584 = vpack.c.b16 %v540, %v536
    %v585 = vpack.c.b16 %v541, %v537
    %v586 = vpack.c.b16 %v542, %v538
    %v587 = vpack.c.b16 %v547, %v543
    %v588 = vpack.c.b16 %v548, %v544
    %v589 = vpack.c.b16 %v549, %v545
    %v590 = vpack.c.b16 %v550, %v546
    %v591 = vpack.c.b16 %v555, %v551
    %v592 = vpack.c.b16 %v556, %v552
    %v593 = vpack.c.b16 %v557, %v553
    %v594 = vpack.c.b16 %v558, %v554
    %v595 = vpack.c.b16 %v563, %v559
    %v596 = vpack.c.b16 %v564, %v560
    %v597 = vpack.c.b16 %v565, %v561
    %v598 = vpack.c.b16 %v566, %v562
    %631 = vmatpush.bf16.msra.mxu0 %v595
    %632 = vmatpush.bf16.msra.mxu0 %v591
    %633 = vmatpush.bf16.msra.mxu0 %v587
    %634 = vmatpush.bf16.msra.mxu0 %v583
    %635 = vmatpush.bf16.msra.mxu0 %v579
    %636 = vmatpush.bf16.msra.mxu0 %v575
    %637 = vmatpush.bf16.msra.mxu0 %v571
    %638 = vmatpush.bf16.msra.mxu0 %v567
    %639 = vmatmul.bf16.gmra.mxu0 0
    %v640 = vpop.f32.mrf.mxu0
    %v641 = vadd.f32 %v365, %v640
    %v642 = vpop.f32.mrf.mxu0
    %643 = vdwg.mxu0
    %644 = vmatpush.bf16.msra.mxu0 %v596
    %645 = vmatpush.bf16.msra.mxu0 %v592
    %646 = vmatpush.bf16.msra.mxu0 %v588
    %647 = vmatpush.bf16.msra.mxu0 %v584
    %648 = vmatpush.bf16.msra.mxu0 %v580
    %649 = vmatpush.bf16.msra.mxu0 %v576
    %650 = vmatpush.bf16.msra.mxu0 %v572
    %651 = vmatpush.bf16.msra.mxu0 %v568
    %652 = vmatmul.bf16.gmra.mxu0 0
    %v653 = vpop.f32.mrf.mxu0
    %v654 = vadd.f32 %v394, %v653
    %v655 = vpop.f32.mrf.mxu0
    %656 = vdwg.mxu0
    %657 = vmatpush.bf16.msra.mxu0 %v597
    %658 = vmatpush.bf16.msra.mxu0 %v593
    %659 = vmatpush.bf16.msra.mxu0 %v589
    %660 = vmatpush.bf16.msra.mxu0 %v585
    %661 = vmatpush.bf16.msra.mxu0 %v581
    %662 = vmatpush.bf16.msra.mxu0 %v577
    %663 = vmatpush.bf16.msra.mxu0 %v573
    %664 = vmatpush.bf16.msra.mxu0 %v569
    %665 = vmatmul.bf16.gmra.mxu0 0
    %v666 = vpop.f32.mrf.mxu0
    %v667 = vadd.f32 %v423, %v666
    %v668 = vpop.f32.mrf.mxu0
    %669 = vdwg.mxu0
    %670 = vmatpush.bf16.msra.mxu0 %v598
    %671 = vmatpush.bf16.msra.mxu0 %v594
    %672 = vmatpush.bf16.msra.mxu0 %v590
    %673 = vmatpush.bf16.msra.mxu0 %v586
    %674 = vmatpush.bf16.msra.mxu0 %v582
    %675 = vmatpush.bf16.msra.mxu0 %v578
    %676 = vmatpush.bf16.msra.mxu0 %v574
    %677 = vmatpush.bf16.msra.mxu0 %v570
    %678 = vmatmul.bf16.gmra.mxu0 0
    %v679 = vpop.f32.mrf.mxu0
    %v680 = vadd.f32 %v452, %v679
    %v681 = vpop.f32.mrf.mxu0
    %682 = vdwg.mxu0
    %v683 = vxor.u32 %v641, 2147483648
    %v684 = vxor.u32 %v654, 2147483648
    %v685 = vmul.f32 %v683, 1.442695
    %v686 = vpow.pop %v685
    %v687 = vmul.f32 %v684, 1.442695
    %v688 = vpow.pop %v687
    %v689 = vadd.f32 %v686, 1.0
    %v690 = vadd.f32 %v688, 1.0
    %v691 = vrcp.pop %v689
    %v692 = vmul.f32 %v689, %v691
    %v693 = vsub.f32 1.0, %v692
    %v694 = vmul.f32 %v691, %v693
    %v695 = vadd.f32 %v691, %v694
    %vm696 = vweird.f32 %v689
    %vm697 = vweird.f32 %v691
    %vm698 = vmor %vm696, %vm697
    %v699 = vsel %vm698, %v691, %v695
    %v700 = vand.u32 2147483647, %v689
    %vm701 = vcmp.eq.f32.partialorder %v700, 8.507059e+37
    %v702 = vand.u32 %v689, 2147483648
    %v703 = vor.u32 1.1754944e-38, %v702
    %v704 = vsel %vm701, %v703, %v699
    %v705 = vmul.f32 1.0, %v704
    %v706 = vrcp.pop %v690
    %v707 = vmul.f32 %v690, %v706
    %v708 = vsub.f32 1.0, %v707
    %v709 = vmul.f32 %v706, %v708
    %v710 = vadd.f32 %v706, %v709
    %vm711 = vweird.f32 %v690
    %vm712 = vweird.f32 %v706
    %vm713 = vmor %vm711, %vm712
    %v714 = vsel %vm713, %v706, %v710
    %v715 = vand.u32 2147483647, %v690
    %vm716 = vcmp.eq.f32.partialorder %v715, 8.507059e+37
    %v717 = vand.u32 %v690, 2147483648
    %v718 = vor.u32 1.1754944e-38, %v717
    %v719 = vsel %vm716, %v718, %v714
    %v720 = vmul.f32 1.0, %v719
    %v721 = vtanh.pop %v680
    %v722 = vxor.u32 %v667, 2147483648
    %v723 = vmul.f32 %v722, 1.442695
    %v724 = vpow.pop %v723
    %v725 = vadd.f32 %v724, 1.0
    %v726 = vrcp.pop %v725
    %v727 = vmul.f32 %v725, %v726
    %v728 = vsub.f32 1.0, %v727
    %v729 = vmul.f32 %v726, %v728
    %v730 = vadd.f32 %v726, %v729
    %vm731 = vweird.f32 %v725
    %vm732 = vweird.f32 %v726
    %vm733 = vmor %vm731, %vm732
    %v734 = vsel %vm733, %v726, %v730
    %v735 = vand.u32 2147483647, %v725
    %vm736 = vcmp.eq.f32.partialorder %v735, 8.507059e+37
    %v737 = vand.u32 %v725, 2147483648
    %v738 = vor.u32 1.1754944e-38, %v737
    %v739 = vsel %vm736, %v738, %v734
    %v740 = vmul.f32 1.0, %v739
    %v741 = vmul.f32 %v720, 0.0
    %v742 = vmul.f32 %v705, %v721
    %v743 = vadd.f32 %v741, %v742
    %v744 = vtanh.pop %v743
    %v745 = vmul.f32 %v740, %v744
    %v746 = vpack.c.bf16 %v745, %v745
    %747 = vmatpush.bf16.msra.mxu0 %v595
    %748 = vmatpush.bf16.msra.mxu0 %v591
    %749 = vmatpush.bf16.msra.mxu0 %v587
    %750 = vmatpush.bf16.msra.mxu0 %v583
    %751 = vmatpush.bf16.msra.mxu0 %v579
    %752 = vmatpush.bf16.msra.mxu0 %v575
    %753 = vmatpush.bf16.msra.mxu0 %v571
    %754 = vmatpush.bf16.msra.mxu0 %v567
    %755 = vmatmul.bf16.gmra.mxu0 %v746
    %v756 = vpop.f32.mrf.mxu0
    %v757 = vadd.f32 %v367, %v756
    %v758 = vpop.f32.mrf.mxu0
    %759 = vdwg.mxu0
    %760 = vmatpush.bf16.msra.mxu0 %v596
    %761 = vmatpush.bf16.msra.mxu0 %v592
    %762 = vmatpush.bf16.msra.mxu0 %v588
    %763 = vmatpush.bf16.msra.mxu0 %v584
    %764 = vmatpush.bf16.msra.mxu0 %v580
    %765 = vmatpush.bf16.msra.mxu0 %v576
    %766 = vmatpush.bf16.msra.mxu0 %v572
    %767 = vmatpush.bf16.msra.mxu0 %v568
    %768 = vmatmul.bf16.gmra.mxu0 %v746
    %v769 = vpop.f32.mrf.mxu0
    %v770 = vadd.f32 %v396, %v769
    %v771 = vpop.f32.mrf.mxu0
    %772 = vdwg.mxu0
    %773 = vmatpush.bf16.msra.mxu0 %v597
    %774 = vmatpush.bf16.msra.mxu0 %v593
    %775 = vmatpush.bf16.msra.mxu0 %v589
    %776 = vmatpush.bf16.msra.mxu0 %v585
    %777 = vmatpush.bf16.msra.mxu0 %v581
    %778 = vmatpush.bf16.msra.mxu0 %v577
    %779 = vmatpush.bf16.msra.mxu0 %v573
    %780 = vmatpush.bf16.msra.mxu0 %v569
    %781 = vmatmul.bf16.gmra.mxu0 %v746
    %v782 = vpop.f32.mrf.mxu0
    %v783 = vadd.f32 %v425, %v782
    %v784 = vpop.f32.mrf.mxu0
    %785 = vdwg.mxu0
    %786 = vmatpush.bf16.msra.mxu0 %v598
    %787 = vmatpush.bf16.msra.mxu0 %v594
    %788 = vmatpush.bf16.msra.mxu0 %v590
    %789 = vmatpush.bf16.msra.mxu0 %v586
    %790 = vmatpush.bf16.msra.mxu0 %v582
    %791 = vmatpush.bf16.msra.mxu0 %v578
    %792 = vmatpush.bf16.msra.mxu0 %v574
    %793 = vmatpush.bf16.msra.mxu0 %v570
    %794 = vmatmul.bf16.gmra.mxu0 %v746
    %v795 = vpop.f32.mrf.mxu0
    %v796 = vadd.f32 %v454, %v795
    %v797 = vpop.f32.mrf.mxu0
    %798 = vdwg.mxu0
    %v799 = vxor.u32 %v757, 2147483648
    %v800 = vxor.u32 %v770, 2147483648
    %v801 = vmul.f32 %v799, 1.442695
    %v802 = vpow.pop %v801
    %v803 = vmul.f32 %v800, 1.442695
    %v804 = vpow.pop %v803
    %v805 = vadd.f32 %v802, 1.0
    %v806 = vadd.f32 %v804, 1.0
    %v807 = vrcp.pop %v805
    %v808 = vmul.f32 %v805, %v807
    %v809 = vsub.f32 1.0, %v808
    %v810 = vmul.f32 %v807, %v809
    %v811 = vadd.f32 %v807, %v810
    %vm812 = vweird.f32 %v805
    %vm813 = vweird.f32 %v807
    %vm814 = vmor %vm812, %vm813
    %v815 = vsel %vm814, %v807, %v811
    %v816 = vand.u32 2147483647, %v805
    %vm817 = vcmp.eq.f32.partialorder %v816, 8.507059e+37
    %v818 = vand.u32 %v805, 2147483648
    %v819 = vor.u32 1.1754944e-38, %v818
    %v820 = vsel %vm817, %v819, %v815
    %v821 = vmul.f32 1.0, %v820
    %v822 = vrcp.pop %v806
    %v823 = vmul.f32 %v806, %v822
    %v824 = vsub.f32 1.0, %v823
    %v825 = vmul.f32 %v822, %v824
    %v826 = vadd.f32 %v822, %v825
    %vm827 = vweird.f32 %v806
    %vm828 = vweird.f32 %v822
    %vm829 = vmor %vm827, %vm828
    %v830 = vsel %vm829, %v822, %v826
    %v831 = vand.u32 2147483647, %v806
    %vm832 = vcmp.eq.f32.partialorder %v831, 8.507059e+37
    %v833 = vand.u32 %v806, 2147483648
    %v834 = vor.u32 1.1754944e-38, %v833
    %v835 = vsel %vm832, %v834, %v830
    %v836 = vmul.f32 1.0, %v835
    %v837 = vtanh.pop %v796
    %v838 = vxor.u32 %v783, 2147483648
    %v839 = vmul.f32 %v838, 1.442695
    %v840 = vpow.pop %v839
    %v841 = vadd.f32 %v840, 1.0
    %v842 = vrcp.pop %v841
    %v843 = vmul.f32 %v841, %v842
    %v844 = vsub.f32 1.0, %v843
    %v845 = vmul.f32 %v842, %v844
    %v846 = vadd.f32 %v842, %v845
    %vm847 = vweird.f32 %v841
    %vm848 = vweird.f32 %v842
    %vm849 = vmor %vm847, %vm848
    %v850 = vsel %vm849, %v842, %v846
    %v851 = vand.u32 2147483647, %v841
    %vm852 = vcmp.eq.f32.partialorder %v851, 8.507059e+37
    %v853 = vand.u32 %v841, 2147483648
    %v854 = vor.u32 1.1754944e-38, %v853
    %v855 = vsel %vm852, %v854, %v850
    %v856 = vmul.f32 1.0, %v855
    %v857 = vmul.f32 %v836, %v743
    %v858 = vmul.f32 %v821, %v837
    %v859 = vadd.f32 %v857, %v858
    %v860 = vtanh.pop %v859
    %v861 = vmul.f32 %v856, %v860
    %v862 = vpack.c.bf16 %v861, %v861
    %863 = vmatpush.bf16.msra.mxu0 %v595
    %864 = vmatpush.bf16.msra.mxu0 %v591
    %865 = vmatpush.bf16.msra.mxu0 %v587
    %866 = vmatpush.bf16.msra.mxu0 %v583
    %867 = vmatpush.bf16.msra.mxu0 %v579
    %868 = vmatpush.bf16.msra.mxu0 %v575
    %869 = vmatpush.bf16.msra.mxu0 %v571
    %870 = vmatpush.bf16.msra.mxu0 %v567
    %871 = vmatmul.bf16.gmra.mxu0 %v862
    %v872 = vpop.f32.mrf.mxu0
    %v873 = vadd.f32 %v370, %v872
    %v874 = vpop.f32.mrf.mxu0
    %875 = vdwg.mxu0
    %876 = vmatpush.bf16.msra.mxu0 %v596
    %877 = vmatpush.bf16.msra.mxu0 %v592
    %878 = vmatpush.bf16.msra.mxu0 %v588
    %879 = vmatpush.bf16.msra.mxu0 %v584
    %880 = vmatpush.bf16.msra.mxu0 %v580
    %881 = vmatpush.bf16.msra.mxu0 %v576
    %882 = vmatpush.bf16.msra.mxu0 %v572
    %883 = vmatpush.bf16.msra.mxu0 %v568
    %884 = vmatmul.bf16.gmra.mxu0 %v862
    %v885 = vpop.f32.mrf.mxu0
    %v886 = vadd.f32 %v399, %v885
    %v887 = vpop.f32.mrf.mxu0
    %888 = vdwg.mxu0
    %889 = vmatpush.bf16.msra.mxu0 %v597
    %890 = vmatpush.bf16.msra.mxu0 %v593
    %891 = vmatpush.bf16.msra.mxu0 %v589
    %892 = vmatpush.bf16.msra.mxu0 %v585
    %893 = vmatpush.bf16.msra.mxu0 %v581
    %894 = vmatpush.bf16.msra.mxu0 %v577
    %895 = vmatpush.bf16.msra.mxu0 %v573
    %896 = vmatpush.bf16.msra.mxu0 %v569
    %897 = vmatmul.bf16.gmra.mxu0 %v862
    %v898 = vpop.f32.mrf.mxu0
    %v899 = vadd.f32 %v428, %v898
    %v900 = vpop.f32.mrf.mxu0
    %901 = vdwg.mxu0
    %902 = vmatpush.bf16.msra.mxu0 %v598
    %903 = vmatpush.bf16.msra.mxu0 %v594
    %904 = vmatpush.bf16.msra.mxu0 %v590
    %905 = vmatpush.bf16.msra.mxu0 %v586
    %906 = vmatpush.bf16.msra.mxu0 %v582
    %907 = vmatpush.bf16.msra.mxu0 %v578
    %908 = vmatpush.bf16.msra.mxu0 %v574
    %909 = vmatpush.bf16.msra.mxu0 %v570
    %910 = vmatmul.bf16.gmra.mxu0 %v862
    %v911 = vpop.f32.mrf.mxu0
    %v912 = vadd.f32 %v457, %v911
    %v913 = vpop.f32.mrf.mxu0
    %914 = vdwg.mxu0
    %v915 = vxor.u32 %v873, 2147483648
    %v916 = vxor.u32 %v886, 2147483648
    %v917 = vmul.f32 %v915, 1.442695
    %v918 = vpow.pop %v917
    %v919 = vmul.f32 %v916, 1.442695
    %v920 = vpow.pop %v919
    %v921 = vadd.f32 %v918, 1.0
    %v922 = vadd.f32 %v920, 1.0
    %v923 = vrcp.pop %v921
    %v924 = vmul.f32 %v921, %v923
    %v925 = vsub.f32 1.0, %v924
    %v926 = vmul.f32 %v923, %v925
    %v927 = vadd.f32 %v923, %v926
    %vm928 = vweird.f32 %v921
    %vm929 = vweird.f32 %v923
    %vm930 = vmor %vm928, %vm929
    %v931 = vsel %vm930, %v923, %v927
    %v932 = vand.u32 2147483647, %v921
    %vm933 = vcmp.eq.f32.partialorder %v932, 8.507059e+37
    %v934 = vand.u32 %v921, 2147483648
    %v935 = vor.u32 1.1754944e-38, %v934
    %v936 = vsel %vm933, %v935, %v931
    %v937 = vmul.f32 1.0, %v936
    %v938 = vrcp.pop %v922
    %v939 = vmul.f32 %v922, %v938
    %v940 = vsub.f32 1.0, %v939
    %v941 = vmul.f32 %v938, %v940
    %v942 = vadd.f32 %v938, %v941
    %vm943 = vweird.f32 %v922
    %vm944 = vweird.f32 %v938
    %vm945 = vmor %vm943, %vm944
    %v946 = vsel %vm945, %v938, %v942
    %v947 = vand.u32 2147483647, %v922
    %vm948 = vcmp.eq.f32.partialorder %v947, 8.507059e+37
    %v949 = vand.u32 %v922, 2147483648
    %v950 = vor.u32 1.1754944e-38, %v949
    %v951 = vsel %vm948, %v950, %v946
    %v952 = vmul.f32 1.0, %v951
    %v953 = vtanh.pop %v912
    %v954 = vxor.u32 %v899, 2147483648
    %v955 = vmul.f32 %v954, 1.442695
    %v956 = vpow.pop %v955
    %v957 = vadd.f32 %v956, 1.0
    %v958 = vrcp.pop %v957
    %v959 = vmul.f32 %v957, %v958
    %v960 = vsub.f32 1.0, %v959
    %v961 = vmul.f32 %v958, %v960
    %v962 = vadd.f32 %v958, %v961
    %vm963 = vweird.f32 %v957
    %vm964 = vweird.f32 %v958
    %vm965 = vmor %vm963, %vm964
    %v966 = vsel %vm965, %v958, %v962
    %v967 = vand.u32 2147483647, %v957
    %vm968 = vcmp.eq.f32.partialorder %v967, 8.507059e+37
    %v969 = vand.u32 %v957, 2147483648
    %v970 = vor.u32 1.1754944e-38, %v969
    %v971 = vsel %vm968, %v970, %v966
    %v972 = vmul.f32 1.0, %v971
    %v973 = vmul.f32 %v952, %v859
    %v974 = vmul.f32 %v937, %v953
    %v975 = vadd.f32 %v973, %v974
    %v976 = vtanh.pop %v975
    %v977 = vmul.f32 %v972, %v976
    %v978 = vpack.c.bf16 %v977, %v977
    %979 = vmatpush.bf16.msra.mxu0 %v595
    %980 = vmatpush.bf16.msra.mxu0 %v591
    %981 = vmatpush.bf16.msra.mxu0 %v587
    %982 = vmatpush.bf16.msra.mxu0 %v583
    %983 = vmatpush.bf16.msra.mxu0 %v579
    %984 = vmatpush.bf16.msra.mxu0 %v575
    %985 = vmatpush.bf16.msra.mxu0 %v571
    %986 = vmatpush.bf16.msra.mxu0 %v567
    %987 = vmatmul.bf16.gmra.mxu0 %v978
    %v988 = vpop.f32.mrf.mxu0
    %v989 = vadd.f32 %v372, %v988
    %v990 = vpop.f32.mrf.mxu0
    %991 = vdwg.mxu0
    %992 = vmatpush.bf16.msra.mxu0 %v596
    %993 = vmatpush.bf16.msra.mxu0 %v592
    %994 = vmatpush.bf16.msra.mxu0 %v588
    %995 = vmatpush.bf16.msra.mxu0 %v584
    %996 = vmatpush.bf16.msra.mxu0 %v580
    %997 = vmatpush.bf16.msra.mxu0 %v576
    %998 = vmatpush.bf16.msra.mxu0 %v572
    %999 = vmatpush.bf16.msra.mxu0 %v568
    %1000 = vmatmul.bf16.gmra.mxu0 %v978
    %v1001 = vpop.f32.mrf.mxu0
    %v1002 = vadd.f32 %v401, %v1001
    %v1003 = vpop.f32.mrf.mxu0
    %1004 = vdwg.mxu0
    %1005 = vmatpush.bf16.msra.mxu0 %v597
    %1006 = vmatpush.bf16.msra.mxu0 %v593
    %1007 = vmatpush.bf16.msra.mxu0 %v589
    %1008 = vmatpush.bf16.msra.mxu0 %v585
    %1009 = vmatpush.bf16.msra.mxu0 %v581
    %1010 = vmatpush.bf16.msra.mxu0 %v577
    %1011 = vmatpush.bf16.msra.mxu0 %v573
    %1012 = vmatpush.bf16.msra.mxu0 %v569
    %1013 = vmatmul.bf16.gmra.mxu0 %v978
    %v1014 = vpop.f32.mrf.mxu0
    %v1015 = vadd.f32 %v430, %v1014
    %v1016 = vpop.f32.mrf.mxu0
    %1017 = vdwg.mxu0
    %1018 = vmatpush.bf16.msra.mxu0 %v598
    %1019 = vmatpush.bf16.msra.mxu0 %v594
    %1020 = vmatpush.bf16.msra.mxu0 %v590
    %1021 = vmatpush.bf16.msra.mxu0 %v586
    %1022 = vmatpush.bf16.msra.mxu0 %v582
    %1023 = vmatpush.bf16.msra.mxu0 %v578
    %1024 = vmatpush.bf16.msra.mxu0 %v574
    %1025 = vmatpush.bf16.msra.mxu0 %v570
    %1026 = vmatmul.bf16.gmra.mxu0 %v978
    %v1027 = vpop.f32.mrf.mxu0
    %v1028 = vadd.f32 %v459, %v1027
    %v1029 = vpop.f32.mrf.mxu0
    %1030 = vdwg.mxu0
    %v1031 = vxor.u32 %v989, 2147483648
    %v1032 = vxor.u32 %v1002, 2147483648
    %v1033 = vmul.f32 %v1031, 1.442695
    %v1034 = vpow.pop %v1033
    %v1035 = vmul.f32 %v1032, 1.442695
    %v1036 = vpow.pop %v1035
    %v1037 = vadd.f32 %v1034, 1.0
    %v1038 = vadd.f32 %v1036, 1.0
    %v1039 = vrcp.pop %v1037
    %v1040 = vmul.f32 %v1037, %v1039
    %v1041 = vsub.f32 1.0, %v1040
    %v1042 = vmul.f32 %v1039, %v1041
    %v1043 = vadd.f32 %v1039, %v1042
    %vm1044 = vweird.f32 %v1037
    %vm1045 = vweird.f32 %v1039
    %vm1046 = vmor %vm1044, %vm1045
    %v1047 = vsel %vm1046, %v1039, %v1043
    %v1048 = vand.u32 2147483647, %v1037
    %vm1049 = vcmp.eq.f32.partialorder %v1048, 8.507059e+37
    %v1050 = vand.u32 %v1037, 2147483648
    %v1051 = vor.u32 1.1754944e-38, %v1050
    %v1052 = vsel %vm1049, %v1051, %v1047
    %v1053 = vmul.f32 1.0, %v1052
    %v1054 = vrcp.pop %v1038
    %v1055 = vmul.f32 %v1038, %v1054
    %v1056 = vsub.f32 1.0, %v1055
    %v1057 = vmul.f32 %v1054, %v1056
    %v1058 = vadd.f32 %v1054, %v1057
    %vm1059 = vweird.f32 %v1038
    %vm1060 = vweird.f32 %v1054
    %vm1061 = vmor %vm1059, %vm1060
    %v1062 = vsel %vm1061, %v1054, %v1058
    %v1063 = vand.u32 2147483647, %v1038
    %vm1064 = vcmp.eq.f32.partialorder %v1063, 8.507059e+37
    %v1065 = vand.u32 %v1038, 2147483648
    %v1066 = vor.u32 1.1754944e-38, %v1065
    %v1067 = vsel %vm1064, %v1066, %v1062
    %v1068 = vmul.f32 1.0, %v1067
    %v1069 = vtanh.pop %v1028
    %v1070 = vxor.u32 %v1015, 2147483648
    %v1071 = vmul.f32 %v1070, 1.442695
    %v1072 = vpow.pop %v1071
    %v1073 = vadd.f32 %v1072, 1.0
    %v1074 = vrcp.pop %v1073
    %v1075 = vmul.f32 %v1073, %v1074
    %v1076 = vsub.f32 1.0, %v1075
    %v1077 = vmul.f32 %v1074, %v1076
    %v1078 = vadd.f32 %v1074, %v1077
    %vm1079 = vweird.f32 %v1073
    %vm1080 = vweird.f32 %v1074
    %vm1081 = vmor %vm1079, %vm1080
    %v1082 = vsel %vm1081, %v1074, %v1078
    %v1083 = vand.u32 2147483647, %v1073
    %vm1084 = vcmp.eq.f32.partialorder %v1083, 8.507059e+37
    %v1085 = vand.u32 %v1073, 2147483648
    %v1086 = vor.u32 1.1754944e-38, %v1085
    %v1087 = vsel %vm1084, %v1086, %v1082
    %v1088 = vmul.f32 1.0, %v1087
    %v1089 = vmul.f32 %v1068, %v975
    %v1090 = vmul.f32 %v1053, %v1069
    %v1091 = vadd.f32 %v1089, %v1090
    %v1092 = vtanh.pop %v1091
    %v1093 = vmul.f32 %v1088, %v1092
    %v1094 = vpack.c.bf16 %v1093, %v1093
    %1095 = vmatpush.bf16.msra.mxu0 %v595
    %1096 = vmatpush.bf16.msra.mxu0 %v591
    %1097 = vmatpush.bf16.msra.mxu0 %v587
    %1098 = vmatpush.bf16.msra.mxu0 %v583
    %1099 = vmatpush.bf16.msra.mxu0 %v579
    %1100 = vmatpush.bf16.msra.mxu0 %v575
    %1101 = vmatpush.bf16.msra.mxu0 %v571
    %1102 = vmatpush.bf16.msra.mxu0 %v567
    %1103 = vmatmul.bf16.gmra.mxu0 %v1094
    %v1104 = vpop.f32.mrf.mxu0
    %v1105 = vadd.f32 %v375, %v1104
    %v1106 = vpop.f32.mrf.mxu0
    %1107 = vdwg.mxu0
    %1108 = vmatpush.bf16.msra.mxu0 %v596
    %1109 = vmatpush.bf16.msra.mxu0 %v592
    %1110 = vmatpush.bf16.msra.mxu0 %v588
    %1111 = vmatpush.bf16.msra.mxu0 %v584
    %1112 = vmatpush.bf16.msra.mxu0 %v580
    %1113 = vmatpush.bf16.msra.mxu0 %v576
    %1114 = vmatpush.bf16.msra.mxu0 %v572
    %1115 = vmatpush.bf16.msra.mxu0 %v568
    %1116 = vmatmul.bf16.gmra.mxu0 %v1094
    %v1117 = vpop.f32.mrf.mxu0
    %v1118 = vadd.f32 %v404, %v1117
    %v1119 = vpop.f32.mrf.mxu0
    %1120 = vdwg.mxu0
    %1121 = vmatpush.bf16.msra.mxu0 %v597
    %1122 = vmatpush.bf16.msra.mxu0 %v593
    %1123 = vmatpush.bf16.msra.mxu0 %v589
    %1124 = vmatpush.bf16.msra.mxu0 %v585
    %1125 = vmatpush.bf16.msra.mxu0 %v581
    %1126 = vmatpush.bf16.msra.mxu0 %v577
    %1127 = vmatpush.bf16.msra.mxu0 %v573
    %1128 = vmatpush.bf16.msra.mxu0 %v569
    %1129 = vmatmul.bf16.gmra.mxu0 %v1094
    %v1130 = vpop.f32.mrf.mxu0
    %v1131 = vadd.f32 %v433, %v1130
    %v1132 = vpop.f32.mrf.mxu0
    %1133 = vdwg.mxu0
    %1134 = vmatpush.bf16.msra.mxu0 %v598
    %1135 = vmatpush.bf16.msra.mxu0 %v594
    %1136 = vmatpush.bf16.msra.mxu0 %v590
    %1137 = vmatpush.bf16.msra.mxu0 %v586
    %1138 = vmatpush.bf16.msra.mxu0 %v582
    %1139 = vmatpush.bf16.msra.mxu0 %v578
    %1140 = vmatpush.bf16.msra.mxu0 %v574
    %1141 = vmatpush.bf16.msra.mxu0 %v570
    %1142 = vmatmul.bf16.gmra.mxu0 %v1094
    %v1143 = vpop.f32.mrf.mxu0
    %v1144 = vadd.f32 %v462, %v1143
    %v1145 = vpop.f32.mrf.mxu0
    %1146 = vdwg.mxu0
    %v1147 = vxor.u32 %v1105, 2147483648
    %v1148 = vxor.u32 %v1118, 2147483648
    %v1149 = vmul.f32 %v1147, 1.442695
    %v1150 = vpow.pop %v1149
    %v1151 = vmul.f32 %v1148, 1.442695
    %v1152 = vpow.pop %v1151
    %v1153 = vadd.f32 %v1150, 1.0
    %v1154 = vadd.f32 %v1152, 1.0
    %v1155 = vrcp.pop %v1153
    %v1156 = vmul.f32 %v1153, %v1155
    %v1157 = vsub.f32 1.0, %v1156
    %v1158 = vmul.f32 %v1155, %v1157
    %v1159 = vadd.f32 %v1155, %v1158
    %vm1160 = vweird.f32 %v1153
    %vm1161 = vweird.f32 %v1155
    %vm1162 = vmor %vm1160, %vm1161
    %v1163 = vsel %vm1162, %v1155, %v1159
    %v1164 = vand.u32 2147483647, %v1153
    %vm1165 = vcmp.eq.f32.partialorder %v1164, 8.507059e+37
    %v1166 = vand.u32 %v1153, 2147483648
    %v1167 = vor.u32 1.1754944e-38, %v1166
    %v1168 = vsel %vm1165, %v1167, %v1163
    %v1169 = vmul.f32 1.0, %v1168
    %v1170 = vrcp.pop %v1154
    %v1171 = vmul.f32 %v1154, %v1170
    %v1172 = vsub.f32 1.0, %v1171
    %v1173 = vmul.f32 %v1170, %v1172
    %v1174 = vadd.f32 %v1170, %v1173
    %vm1175 = vweird.f32 %v1154
    %vm1176 = vweird.f32 %v1170
    %vm1177 = vmor %vm1175, %vm1176
    %v1178 = vsel %vm1177, %v1170, %v1174
    %v1179 = vand.u32 2147483647, %v1154
    %vm1180 = vcmp.eq.f32.partialorder %v1179, 8.507059e+37
    %v1181 = vand.u32 %v1154, 2147483648
    %v1182 = vor.u32 1.1754944e-38, %v1181
    %v1183 = vsel %vm1180, %v1182, %v1178
    %v1184 = vmul.f32 1.0, %v1183
    %v1185 = vtanh.pop %v1144
    %v1186 = vxor.u32 %v1131, 2147483648
    %v1187 = vmul.f32 %v1186, 1.442695
    %v1188 = vpow.pop %v1187
    %v1189 = vadd.f32 %v1188, 1.0
    %v1190 = vrcp.pop %v1189
    %v1191 = vmul.f32 %v1189, %v1190
    %v1192 = vsub.f32 1.0, %v1191
    %v1193 = vmul.f32 %v1190, %v1192
    %v1194 = vadd.f32 %v1190, %v1193
    %vm1195 = vweird.f32 %v1189
    %vm1196 = vweird.f32 %v1190
    %vm1197 = vmor %vm1195, %vm1196
    %v1198 = vsel %vm1197, %v1190, %v1194
    %v1199 = vand.u32 2147483647, %v1189
    %vm1200 = vcmp.eq.f32.partialorder %v1199, 8.507059e+37
    %v1201 = vand.u32 %v1189, 2147483648
    %v1202 = vor.u32 1.1754944e-38, %v1201
    %v1203 = vsel %vm1200, %v1202, %v1198
    %v1204 = vmul.f32 1.0, %v1203
    %v1205 = vmul.f32 %v1184, %v1091
    %v1206 = vmul.f32 %v1169, %v1185
    %v1207 = vadd.f32 %v1205, %v1206
    %v1208 = vtanh.pop %v1207
    %v1209 = vmul.f32 %v1204, %v1208
    %v1210 = vpack.c.bf16 %v1209, %v1209
    %1211 = vmatpush.bf16.msra.mxu0 %v595
    %1212 = vmatpush.bf16.msra.mxu0 %v591
    %1213 = vmatpush.bf16.msra.mxu0 %v587
    %1214 = vmatpush.bf16.msra.mxu0 %v583
    %1215 = vmatpush.bf16.msra.mxu0 %v579
    %1216 = vmatpush.bf16.msra.mxu0 %v575
    %1217 = vmatpush.bf16.msra.mxu0 %v571
    %1218 = vmatpush.bf16.msra.mxu0 %v567
    %1219 = vmatmul.bf16.gmra.mxu0 %v1210
    %v1220 = vpop.f32.mrf.mxu0
    %v1221 = vadd.f32 %v377, %v1220
    %v1222 = vpop.f32.mrf.mxu0
    %1223 = vdwg.mxu0
    %1224 = vmatpush.bf16.msra.mxu0 %v596
    %1225 = vmatpush.bf16.msra.mxu0 %v592
    %1226 = vmatpush.bf16.msra.mxu0 %v588
    %1227 = vmatpush.bf16.msra.mxu0 %v584
    %1228 = vmatpush.bf16.msra.mxu0 %v580
    %1229 = vmatpush.bf16.msra.mxu0 %v576
    %1230 = vmatpush.bf16.msra.mxu0 %v572
    %1231 = vmatpush.bf16.msra.mxu0 %v568
    %1232 = vmatmul.bf16.gmra.mxu0 %v1210
    %v1233 = vpop.f32.mrf.mxu0
    %v1234 = vadd.f32 %v406, %v1233
    %v1235 = vpop.f32.mrf.mxu0
    %1236 = vdwg.mxu0
    %1237 = vmatpush.bf16.msra.mxu0 %v597
    %1238 = vmatpush.bf16.msra.mxu0 %v593
    %1239 = vmatpush.bf16.msra.mxu0 %v589
    %1240 = vmatpush.bf16.msra.mxu0 %v585
    %1241 = vmatpush.bf16.msra.mxu0 %v581
    %1242 = vmatpush.bf16.msra.mxu0 %v577
    %1243 = vmatpush.bf16.msra.mxu0 %v573
    %1244 = vmatpush.bf16.msra.mxu0 %v569
    %1245 = vmatmul.bf16.gmra.mxu0 %v1210
    %v1246 = vpop.f32.mrf.mxu0
    %v1247 = vadd.f32 %v435, %v1246
    %v1248 = vpop.f32.mrf.mxu0
    %1249 = vdwg.mxu0
    %1250 = vmatpush.bf16.msra.mxu0 %v598
    %1251 = vmatpush.bf16.msra.mxu0 %v594
    %1252 = vmatpush.bf16.msra.mxu0 %v590
    %1253 = vmatpush.bf16.msra.mxu0 %v586
    %1254 = vmatpush.bf16.msra.mxu0 %v582
    %1255 = vmatpush.bf16.msra.mxu0 %v578
    %1256 = vmatpush.bf16.msra.mxu0 %v574
    %1257 = vmatpush.bf16.msra.mxu0 %v570
    %1258 = vmatmul.bf16.gmra.mxu0 %v1210
    %v1259 = vpop.f32.mrf.mxu0
    %v1260 = vadd.f32 %v464, %v1259
    %v1261 = vpop.f32.mrf.mxu0
    %1262 = vdwg.mxu0
    %v1263 = vxor.u32 %v1221, 2147483648
    %v1264 = vxor.u32 %v1234, 2147483648
    %v1265 = vmul.f32 %v1263, 1.442695
    %v1266 = vpow.pop %v1265
    %v1267 = vmul.f32 %v1264, 1.442695
    %v1268 = vpow.pop %v1267
    %v1269 = vadd.f32 %v1266, 1.0
    %v1270 = vadd.f32 %v1268, 1.0
    %v1271 = vrcp.pop %v1269
    %v1272 = vmul.f32 %v1269, %v1271
    %v1273 = vsub.f32 1.0, %v1272
    %v1274 = vmul.f32 %v1271, %v1273
    %v1275 = vadd.f32 %v1271, %v1274
    %vm1276 = vweird.f32 %v1269
    %vm1277 = vweird.f32 %v1271
    %vm1278 = vmor %vm1276, %vm1277
    %v1279 = vsel %vm1278, %v1271, %v1275
    %v1280 = vand.u32 2147483647, %v1269
    %vm1281 = vcmp.eq.f32.partialorder %v1280, 8.507059e+37
    %v1282 = vand.u32 %v1269, 2147483648
    %v1283 = vor.u32 1.1754944e-38, %v1282
    %v1284 = vsel %vm1281, %v1283, %v1279
    %v1285 = vmul.f32 1.0, %v1284
    %v1286 = vrcp.pop %v1270
    %v1287 = vmul.f32 %v1270, %v1286
    %v1288 = vsub.f32 1.0, %v1287
    %v1289 = vmul.f32 %v1286, %v1288
    %v1290 = vadd.f32 %v1286, %v1289
    %vm1291 = vweird.f32 %v1270
    %vm1292 = vweird.f32 %v1286
    %vm1293 = vmor %vm1291, %vm1292
    %v1294 = vsel %vm1293, %v1286, %v1290
    %v1295 = vand.u32 2147483647, %v1270
    %vm1296 = vcmp.eq.f32.partialorder %v1295, 8.507059e+37
    %v1297 = vand.u32 %v1270, 2147483648
    %v1298 = vor.u32 1.1754944e-38, %v1297
    %v1299 = vsel %vm1296, %v1298, %v1294
    %v1300 = vmul.f32 1.0, %v1299
    %v1301 = vtanh.pop %v1260
    %v1302 = vxor.u32 %v1247, 2147483648
    %v1303 = vmul.f32 %v1302, 1.442695
    %v1304 = vpow.pop %v1303
    %v1305 = vadd.f32 %v1304, 1.0
    %v1306 = vrcp.pop %v1305
    %v1307 = vmul.f32 %v1305, %v1306
    %v1308 = vsub.f32 1.0, %v1307
    %v1309 = vmul.f32 %v1306, %v1308
    %v1310 = vadd.f32 %v1306, %v1309
    %vm1311 = vweird.f32 %v1305
    %vm1312 = vweird.f32 %v1306
    %vm1313 = vmor %vm1311, %vm1312
    %v1314 = vsel %vm1313, %v1306, %v1310
    %v1315 = vand.u32 2147483647, %v1305
    %vm1316 = vcmp.eq.f32.partialorder %v1315, 8.507059e+37
    %v1317 = vand.u32 %v1305, 2147483648
    %v1318 = vor.u32 1.1754944e-38, %v1317
    %v1319 = vsel %vm1316, %v1318, %v1314
    %v1320 = vmul.f32 1.0, %v1319
    %v1321 = vmul.f32 %v1300, %v1207
    %v1322 = vmul.f32 %v1285, %v1301
    %v1323 = vadd.f32 %v1321, %v1322
    %v1324 = vtanh.pop %v1323
    %v1325 = vmul.f32 %v1320, %v1324
    %v1326 = vpack.c.bf16 %v1325, %v1325
    %1327 = vmatpush.bf16.msra.mxu0 %v595
    %1328 = vmatpush.bf16.msra.mxu0 %v591
    %1329 = vmatpush.bf16.msra.mxu0 %v587
    %1330 = vmatpush.bf16.msra.mxu0 %v583
    %1331 = vmatpush.bf16.msra.mxu0 %v579
    %1332 = vmatpush.bf16.msra.mxu0 %v575
    %1333 = vmatpush.bf16.msra.mxu0 %v571
    %1334 = vmatpush.bf16.msra.mxu0 %v567
    %1335 = vmatmul.bf16.gmra.mxu0 %v1326
    %v1336 = vpop.f32.mrf.mxu0
    %v1337 = vadd.f32 %v380, %v1336
    %v1338 = vpop.f32.mrf.mxu0
    %1339 = vdwg.mxu0
    %1340 = vmatpush.bf16.msra.mxu0 %v596
    %1341 = vmatpush.bf16.msra.mxu0 %v592
    %1342 = vmatpush.bf16.msra.mxu0 %v588
    %1343 = vmatpush.bf16.msra.mxu0 %v584
    %1344 = vmatpush.bf16.msra.mxu0 %v580
    %1345 = vmatpush.bf16.msra.mxu0 %v576
    %1346 = vmatpush.bf16.msra.mxu0 %v572
    %1347 = vmatpush.bf16.msra.mxu0 %v568
    %1348 = vmatmul.bf16.gmra.mxu0 %v1326
    %v1349 = vpop.f32.mrf.mxu0
    %v1350 = vadd.f32 %v409, %v1349
    %v1351 = vpop.f32.mrf.mxu0
    %1352 = vdwg.mxu0
    %1353 = vmatpush.bf16.msra.mxu0 %v597
    %1354 = vmatpush.bf16.msra.mxu0 %v593
    %1355 = vmatpush.bf16.msra.mxu0 %v589
    %1356 = vmatpush.bf16.msra.mxu0 %v585
    %1357 = vmatpush.bf16.msra.mxu0 %v581
    %1358 = vmatpush.bf16.msra.mxu0 %v577
    %1359 = vmatpush.bf16.msra.mxu0 %v573
    %1360 = vmatpush.bf16.msra.mxu0 %v569
    %1361 = vmatmul.bf16.gmra.mxu0 %v1326
    %v1362 = vpop.f32.mrf.mxu0
    %v1363 = vadd.f32 %v438, %v1362
    %v1364 = vpop.f32.mrf.mxu0
    %1365 = vdwg.mxu0
    %1366 = vmatpush.bf16.msra.mxu0 %v598
    %1367 = vmatpush.bf16.msra.mxu0 %v594
    %1368 = vmatpush.bf16.msra.mxu0 %v590
    %1369 = vmatpush.bf16.msra.mxu0 %v586
    %1370 = vmatpush.bf16.msra.mxu0 %v582
    %1371 = vmatpush.bf16.msra.mxu0 %v578
    %1372 = vmatpush.bf16.msra.mxu0 %v574
    %1373 = vmatpush.bf16.msra.mxu0 %v570
    %1374 = vmatmul.bf16.gmra.mxu0 %v1326
    %v1375 = vpop.f32.mrf.mxu0
    %v1376 = vadd.f32 %v467, %v1375
    %v1377 = vpop.f32.mrf.mxu0
    %1378 = vdwg.mxu0
    %v1379 = vxor.u32 %v1337, 2147483648
    %v1380 = vxor.u32 %v1350, 2147483648
    %v1381 = vmul.f32 %v1379, 1.442695
    %v1382 = vpow.pop %v1381
    %v1383 = vmul.f32 %v1380, 1.442695
    %v1384 = vpow.pop %v1383
    %v1385 = vadd.f32 %v1382, 1.0
    %v1386 = vadd.f32 %v1384, 1.0
    %v1387 = vrcp.pop %v1385
    %v1388 = vmul.f32 %v1385, %v1387
    %v1389 = vsub.f32 1.0, %v1388
    %v1390 = vmul.f32 %v1387, %v1389
    %v1391 = vadd.f32 %v1387, %v1390
    %vm1392 = vweird.f32 %v1385
    %vm1393 = vweird.f32 %v1387
    %vm1394 = vmor %vm1392, %vm1393
    %v1395 = vsel %vm1394, %v1387, %v1391
    %v1396 = vand.u32 2147483647, %v1385
    %vm1397 = vcmp.eq.f32.partialorder %v1396, 8.507059e+37
    %v1398 = vand.u32 %v1385, 2147483648
    %v1399 = vor.u32 1.1754944e-38, %v1398
    %v1400 = vsel %vm1397, %v1399, %v1395
    %v1401 = vmul.f32 1.0, %v1400
    %v1402 = vrcp.pop %v1386
    %v1403 = vmul.f32 %v1386, %v1402
    %v1404 = vsub.f32 1.0, %v1403
    %v1405 = vmul.f32 %v1402, %v1404
    %v1406 = vadd.f32 %v1402, %v1405
    %vm1407 = vweird.f32 %v1386
    %vm1408 = vweird.f32 %v1402
    %vm1409 = vmor %vm1407, %vm1408
    %v1410 = vsel %vm1409, %v1402, %v1406
    %v1411 = vand.u32 2147483647, %v1386
    %vm1412 = vcmp.eq.f32.partialorder %v1411, 8.507059e+37
    %v1413 = vand.u32 %v1386, 2147483648
    %v1414 = vor.u32 1.1754944e-38, %v1413
    %v1415 = vsel %vm1412, %v1414, %v1410
    %v1416 = vmul.f32 1.0, %v1415
    %v1417 = vtanh.pop %v1376
    %v1418 = vxor.u32 %v1363, 2147483648
    %v1419 = vmul.f32 %v1418, 1.442695
    %v1420 = vpow.pop %v1419
    %v1421 = vadd.f32 %v1420, 1.0
    %v1422 = vrcp.pop %v1421
    %v1423 = vmul.f32 %v1421, %v1422
    %v1424 = vsub.f32 1.0, %v1423
    %v1425 = vmul.f32 %v1422, %v1424
    %v1426 = vadd.f32 %v1422, %v1425
    %vm1427 = vweird.f32 %v1421
    %vm1428 = vweird.f32 %v1422
    %vm1429 = vmor %vm1427, %vm1428
    %v1430 = vsel %vm1429, %v1422, %v1426
    %v1431 = vand.u32 2147483647, %v1421
    %vm1432 = vcmp.eq.f32.partialorder %v1431, 8.507059e+37
    %v1433 = vand.u32 %v1421, 2147483648
    %v1434 = vor.u32 1.1754944e-38, %v1433
    %v1435 = vsel %vm1432, %v1434, %v1430
    %v1436 = vmul.f32 1.0, %v1435
    %v1437 = vmul.f32 %v1416, %v1323
    %v1438 = vmul.f32 %v1401, %v1417
    %v1439 = vadd.f32 %v1437, %v1438
    %v1440 = vtanh.pop %v1439
    %v1441 = vmul.f32 %v1436, %v1440
    %v1442 = vpack.c.bf16 %v1441, %v1441
    %1443 = vmatpush.bf16.msra.mxu0 %v595
    %1444 = vmatpush.bf16.msra.mxu0 %v591
    %1445 = vmatpush.bf16.msra.mxu0 %v587
    %1446 = vmatpush.bf16.msra.mxu0 %v583
    %1447 = vmatpush.bf16.msra.mxu0 %v579
    %1448 = vmatpush.bf16.msra.mxu0 %v575
    %1449 = vmatpush.bf16.msra.mxu0 %v571
    %1450 = vmatpush.bf16.msra.mxu0 %v567
    %1451 = vmatmul.bf16.gmra.mxu0 %v1442
    %v1452 = vpop.f32.mrf.mxu0
    %v1453 = vadd.f32 %v382, %v1452
    %v1454 = vpop.f32.mrf.mxu0
    %1455 = vdwg.mxu0
    %1456 = vmatpush.bf16.msra.mxu0 %v596
    %1457 = vmatpush.bf16.msra.mxu0 %v592
    %1458 = vmatpush.bf16.msra.mxu0 %v588
    %1459 = vmatpush.bf16.msra.mxu0 %v584
    %1460 = vmatpush.bf16.msra.mxu0 %v580
    %1461 = vmatpush.bf16.msra.mxu0 %v576
    %1462 = vmatpush.bf16.msra.mxu0 %v572
    %1463 = vmatpush.bf16.msra.mxu0 %v568
    %1464 = vmatmul.bf16.gmra.mxu0 %v1442
    %v1465 = vpop.f32.mrf.mxu0
    %v1466 = vadd.f32 %v411, %v1465
    %v1467 = vpop.f32.mrf.mxu0
    %1468 = vdwg.mxu0
    %1469 = vmatpush.bf16.msra.mxu0 %v597
    %1470 = vmatpush.bf16.msra.mxu0 %v593
    %1471 = vmatpush.bf16.msra.mxu0 %v589
    %1472 = vmatpush.bf16.msra.mxu0 %v585
    %1473 = vmatpush.bf16.msra.mxu0 %v581
    %1474 = vmatpush.bf16.msra.mxu0 %v577
    %1475 = vmatpush.bf16.msra.mxu0 %v573
    %1476 = vmatpush.bf16.msra.mxu0 %v569
    %1477 = vmatmul.bf16.gmra.mxu0 %v1442
    %v1478 = vpop.f32.mrf.mxu0
    %v1479 = vadd.f32 %v440, %v1478
    %v1480 = vpop.f32.mrf.mxu0
    %1481 = vdwg.mxu0
    %1482 = vmatpush.bf16.msra.mxu0 %v598
    %1483 = vmatpush.bf16.msra.mxu0 %v594
    %1484 = vmatpush.bf16.msra.mxu0 %v590
    %1485 = vmatpush.bf16.msra.mxu0 %v586
    %1486 = vmatpush.bf16.msra.mxu0 %v582
    %1487 = vmatpush.bf16.msra.mxu0 %v578
    %1488 = vmatpush.bf16.msra.mxu0 %v574
    %1489 = vmatpush.bf16.msra.mxu0 %v570
    %1490 = vmatmul.bf16.gmra.mxu0 %v1442
    %v1491 = vpop.f32.mrf.mxu0
    %v1492 = vadd.f32 %v469, %v1491
    %v1493 = vpop.f32.mrf.mxu0
    %1494 = vdwg.mxu0
    %v1495 = vxor.u32 %v1453, 2147483648
    %v1496 = vxor.u32 %v1466, 2147483648
    %v1497 = vmul.f32 %v1495, 1.442695
    %v1498 = vpow.pop %v1497
    %v1499 = vmul.f32 %v1496, 1.442695
    %v1500 = vpow.pop %v1499
    %v1501 = vadd.f32 %v1498, 1.0
    %v1502 = vadd.f32 %v1500, 1.0
    %v1503 = vrcp.pop %v1501
    %v1504 = vmul.f32 %v1501, %v1503
    %v1505 = vsub.f32 1.0, %v1504
    %v1506 = vmul.f32 %v1503, %v1505
    %v1507 = vadd.f32 %v1503, %v1506
    %vm1508 = vweird.f32 %v1501
    %vm1509 = vweird.f32 %v1503
    %vm1510 = vmor %vm1508, %vm1509
    %v1511 = vsel %vm1510, %v1503, %v1507
    %v1512 = vand.u32 2147483647, %v1501
    %vm1513 = vcmp.eq.f32.partialorder %v1512, 8.507059e+37
    %v1514 = vand.u32 %v1501, 2147483648
    %v1515 = vor.u32 1.1754944e-38, %v1514
    %v1516 = vsel %vm1513, %v1515, %v1511
    %v1517 = vmul.f32 1.0, %v1516
    %v1518 = vrcp.pop %v1502
    %v1519 = vmul.f32 %v1502, %v1518
    %v1520 = vsub.f32 1.0, %v1519
    %v1521 = vmul.f32 %v1518, %v1520
    %v1522 = vadd.f32 %v1518, %v1521
    %vm1523 = vweird.f32 %v1502
    %vm1524 = vweird.f32 %v1518
    %vm1525 = vmor %vm1523, %vm1524
    %v1526 = vsel %vm1525, %v1518, %v1522
    %v1527 = vand.u32 2147483647, %v1502
    %vm1528 = vcmp.eq.f32.partialorder %v1527, 8.507059e+37
    %v1529 = vand.u32 %v1502, 2147483648
    %v1530 = vor.u32 1.1754944e-38, %v1529
    %v1531 = vsel %vm1528, %v1530, %v1526
    %v1532 = vmul.f32 1.0, %v1531
    %v1533 = vtanh.pop %v1492
    %v1534 = vxor.u32 %v1479, 2147483648
    %v1535 = vmul.f32 %v1534, 1.442695
    %v1536 = vpow.pop %v1535
    %v1537 = vadd.f32 %v1536, 1.0
    %v1538 = vrcp.pop %v1537
    %v1539 = vmul.f32 %v1537, %v1538
    %v1540 = vsub.f32 1.0, %v1539
    %v1541 = vmul.f32 %v1538, %v1540
    %v1542 = vadd.f32 %v1538, %v1541
    %vm1543 = vweird.f32 %v1537
    %vm1544 = vweird.f32 %v1538
    %vm1545 = vmor %vm1543, %vm1544
    %v1546 = vsel %vm1545, %v1538, %v1542
    %v1547 = vand.u32 2147483647, %v1537
    %vm1548 = vcmp.eq.f32.partialorder %v1547, 8.507059e+37
    %v1549 = vand.u32 %v1537, 2147483648
    %v1550 = vor.u32 1.1754944e-38, %v1549
    %v1551 = vsel %vm1548, %v1550, %v1546
    %v1552 = vmul.f32 1.0, %v1551
    %v1553 = vmul.f32 %v1532, %v1439
    %v1554 = vmul.f32 %v1517, %v1533
    %v1555 = vadd.f32 %v1553, %v1554
    %v1556 = vtanh.pop %v1555
    %v1557 = vmul.f32 %v1552, %v1556
    %v1558 = vpack.c.bf16 %v1557, %v1557
    %v1559 = vld [vmem:[%s4] sm:$0xf]
    %v1560 = vld [vmem:[%s4 + $0x4] sm:$0xf]
    %v1561 = vld [vmem:[%s4 + $0x8] sm:$0xf]
    %v1562 = vld [vmem:[%s4 + $0xc] sm:$0xf]
    %v1563 = vld [vmem:[%s4 + $0x10] sm:$0xf]
    %v1564 = vld [vmem:[%s4 + $0x14] sm:$0xf]
    %v1565 = vld [vmem:[%s4 + $0x18] sm:$0xf]
    %v1566 = vld [vmem:[%s4 + $0x1c] sm:$0xf]
    %v1567 = vld [vmem:[%s4 + $0x20] sm:$0xf]
    %v1568 = vld [vmem:[%s4 + $0x24] sm:$0xf]
    %v1569 = vld [vmem:[%s4 + $0x28] sm:$0xf]
    %v1570 = vld [vmem:[%s4 + $0x2c] sm:$0xf]
    %v1571 = vld [vmem:[%s4 + $0x30] sm:$0xf]
    %v1572 = vld [vmem:[%s4 + $0x34] sm:$0xf]
    %v1573 = vld [vmem:[%s4 + $0x38] sm:$0xf]
    %v1574 = vld [vmem:[%s4 + $0x3c] sm:$0xf]
    %v1575 = vld [vmem:[%s5] sm:$0x1]
    %v1577 = vperm.slane %v1575, 0
    %v1595 = vunpack.c.l.b16 %v1559
    %v1596 = vunpack.c.l.b16 %v1560
    %v1597 = vunpack.c.l.b16 %v1561
    %v1598 = vunpack.c.l.b16 %v1562
    %v1599 = vunpack.c.l.b16 %v1563
    %v1600 = vunpack.c.l.b16 %v1564
    %v1601 = vunpack.c.l.b16 %v1565
    %v1602 = vunpack.c.l.b16 %v1566
    %v1603 = vunpack.c.l.b16 %v1567
    %v1604 = vunpack.c.l.b16 %v1568
    %v1605 = vunpack.c.l.b16 %v1569
    %v1606 = vunpack.c.l.b16 %v1570
    %v1607 = vunpack.c.l.b16 %v1571
    %v1608 = vunpack.c.l.b16 %v1572
    %v1609 = vunpack.c.l.b16 %v1573
    %v1610 = vunpack.c.l.b16 %v1574
    %v1611 = vpack.c.b16 %v1596, %v1595
    %v1612 = vpack.c.b16 %v1598, %v1597
    %v1613 = vpack.c.b16 %v1600, %v1599
    %v1614 = vpack.c.b16 %v1602, %v1601
    %v1615 = vpack.c.b16 %v1604, %v1603
    %v1616 = vpack.c.b16 %v1606, %v1605
    %v1617 = vpack.c.b16 %v1608, %v1607
    %v1618 = vpack.c.b16 %v1610, %v1609
    %1627 = vmatpush.bf16.msra.mxu0 %v1618
    %1628 = vmatpush.bf16.msra.mxu0 %v1617
    %1629 = vmatpush.bf16.msra.mxu0 %v1616
    %1630 = vmatpush.bf16.msra.mxu0 %v1615
    %1631 = vmatpush.bf16.msra.mxu0 %v1614
    %1632 = vmatpush.bf16.msra.mxu0 %v1613
    %1633 = vmatpush.bf16.msra.mxu0 %v1612
    %1634 = vmatpush.bf16.msra.mxu0 %v1611
    %1635 = vmatmul.bf16.gmra.mxu0 %v1558
    %v1636 = vpop.f32.mrf.mxu0
    %v1637 = vadd.f32 %v1577, %v1636
    %v1638 = vpop.f32.mrf.mxu0
    %1639 = vdwg.mxu0
    %v1640 = vmax.f32 %v1637, 0.0
    %v1641 = vpack.c.bf16 %v1640, %v1640
    %v1642 = vld [vmem:[%s6] sm:$0xf]
    %v1643 = vld [vmem:[%s6 + $0x4] sm:$0xf]
    %v1644 = vld [vmem:[%s6 + $0x8] sm:$0xf]
    %v1645 = vld [vmem:[%s6 + $0xc] sm:$0xf]
    %v1646 = vld [vmem:[%s6 + $0x10] sm:$0xf]
    %v1647 = vld [vmem:[%s6 + $0x14] sm:$0xf]
    %v1648 = vld [vmem:[%s6 + $0x18] sm:$0xf]
    %v1649 = vld [vmem:[%s6 + $0x1c] sm:$0xf]
    %v1650 = vld [vmem:[%s6 + $0x20] sm:$0xf]
    %v1651 = vld [vmem:[%s6 + $0x24] sm:$0xf]
    %v1652 = vld [vmem:[%s6 + $0x28] sm:$0xf]
    %v1653 = vld [vmem:[%s6 + $0x2c] sm:$0xf]
    %v1654 = vld [vmem:[%s6 + $0x30] sm:$0xf]
    %v1655 = vld [vmem:[%s6 + $0x34] sm:$0xf]
    %v1656 = vld [vmem:[%s6 + $0x38] sm:$0xf]
    %v1657 = vld [vmem:[%s6 + $0x3c] sm:$0xf]
    %v1658 = vld [vmem:[#allocation7] sm:$0x1]
    %v1660 = vperm.slane %v1658, 0
    %v1678 = vunpack.c.l.b16 %v1642
    %v1679 = vunpack.c.l.b16 %v1643
    %v1680 = vunpack.c.l.b16 %v1644
    %v1681 = vunpack.c.l.b16 %v1645
    %v1682 = vunpack.c.l.b16 %v1646
    %v1683 = vunpack.c.l.b16 %v1647
    %v1684 = vunpack.c.l.b16 %v1648
    %v1685 = vunpack.c.l.b16 %v1649
    %v1686 = vunpack.c.l.b16 %v1650
    %v1687 = vunpack.c.l.b16 %v1651
    %v1688 = vunpack.c.l.b16 %v1652
    %v1689 = vunpack.c.l.b16 %v1653
    %v1690 = vunpack.c.l.b16 %v1654
    %v1691 = vunpack.c.l.b16 %v1655
    %v1692 = vunpack.c.l.b16 %v1656
    %v1693 = vunpack.c.l.b16 %v1657
    %v1694 = vpack.c.b16 %v1679, %v1678
    %v1695 = vpack.c.b16 %v1681, %v1680
    %v1696 = vpack.c.b16 %v1683, %v1682
    %v1697 = vpack.c.b16 %v1685, %v1684
    %v1698 = vpack.c.b16 %v1687, %v1686
    %v1699 = vpack.c.b16 %v1689, %v1688
    %v1700 = vpack.c.b16 %v1691, %v1690
    %v1701 = vpack.c.b16 %v1693, %v1692
    %1710 = vmatpush.bf16.msra.mxu0 %v1701
    %1711 = vmatpush.bf16.msra.mxu0 %v1700
    %1712 = vmatpush.bf16.msra.mxu0 %v1699
    %1713 = vmatpush.bf16.msra.mxu0 %v1698
    %1714 = vmatpush.bf16.msra.mxu0 %v1697
    %1715 = vmatpush.bf16.msra.mxu0 %v1696
    %1716 = vmatpush.bf16.msra.mxu0 %v1695
    %1717 = vmatpush.bf16.msra.mxu0 %v1694
    %1718 = vmatmul.bf16.gmra.mxu0 %v1641
    %v1719 = vpop.f32.mrf.mxu0
    %v1720 = vadd.f32 %v1660, %v1719
    %v1721 = vpop.f32.mrf.mxu0
    %1722 = vdwg.mxu0
    %1723 = vst [vmem:[%s8] sm:$0xff] %v1720
    // Predicated region
    $region50: #{gesture_lstm_forward.1} parent=1 // pred_check
      _
    $region51: #{gesture_lstm_forward.1} parent=1 // pred_check_branch
      %1725 = sbr.rel (0) target = $region53
    $region52: #{gesture_lstm_forward.1} parent=1 // pred_region
      _
    $region53: #{gesture_lstm_forward.1} parent=1 // pred_fallthru
      _
    // Predicated region
    $region54: #{gesture_lstm_forward.1} parent=1 // pred_check
      _
    $region55: #{gesture_lstm_forward.1} parent=1 // pred_check_branch
      %1727 = sbr.rel (0) target = $region57
    $region56: #{gesture_lstm_forward.1} parent=1 // pred_region
      _
    $region57: #{gesture_lstm_forward.1} parent=1 // pred_fallthru
      _
    %1728 = vsyncpa [#allocation3], 1
    %1729 = vsyncpa [#allocation5], 1
    %1730 = vsyncpa [#allocation8], 1

</llo_original>
